<compile_context>
chip_gen: v5e
topology: v5e:2x2
jax: 0.10.0
libtpu: 0.0.40
codegen_flags: <defaults>
</compile_context>

<pallas_src>
import jax
import jax.numpy as jnp
from jax.experimental import pallas as pl
from jax.experimental.pallas import tpu as pltpu


# ----------------------------------------------------------------------------
# Plain-JAX glue: bilinear grid_sample (zeros padding, align_corners=False)
# ----------------------------------------------------------------------------
def grid_sample_bilinear_zeros(img, grid):
    # img: (N, C, H, W); grid: (N, H, W, 2) in [-1, 1]; matches
    # F.grid_sample(img, grid) defaults (bilinear, zeros, align_corners=False).
    n, c, H, W = img.shape
    gx = grid[..., 0]
    gy = grid[..., 1]
    ix = ((gx + 1.0) * W - 1.0) * 0.5
    iy = ((gy + 1.0) * H - 1.0) * 0.5
    ix0 = jnp.floor(ix)
    iy0 = jnp.floor(iy)
    ix1 = ix0 + 1.0
    iy1 = iy0 + 1.0
    wx1 = ix - ix0
    wx0 = 1.0 - wx1
    wy1 = iy - iy0
    wy0 = 1.0 - wy1

    img_flat = img.reshape(n, c, H * W)

    def gather(iyc, ixc):
        valid = (ixc >= 0) & (ixc <= W - 1) & (iyc >= 0) & (iyc <= H - 1)
        ixcl = jnp.clip(ixc, 0, W - 1).astype(jnp.int32)
        iycl = jnp.clip(iyc, 0, H - 1).astype(jnp.int32)
        flat = (iycl * W + ixcl).reshape(n, 1, H * W)
        v = jnp.take_along_axis(img_flat, flat, axis=2).reshape(n, c, H, W)
        return v * valid[:, None, :, :].astype(img.dtype)

    out = (gather(iy0, ix0) * (wy0 * wx0)[:, None]
           + gather(iy0, ix1) * (wy0 * wx1)[:, None]
           + gather(iy1, ix0) * (wy1 * wx0)[:, None]
           + gather(iy1, ix1) * (wy1 * wx1)[:, None])
    return out


# ----------------------------------------------------------------------------
# Layout helpers (host side)
# ----------------------------------------------------------------------------
def _round_up(x, m):
    return ((x + m - 1) // m) * m


def _lane_pack_factor(n, w):
    # Pack P batch items side-by-side along the lane axis when w < 128 so the
    # minor dim of every block is lane-dense; P must divide n.
    target = max(1, 128 // w)
    if target <= 1 or n <= 1:
        return 1
    for p in range(min(n, target), 0, -1):
        if n % p == 0:
            return p
    return 1


def _pack_and_pad(x, P, hp, pw, dtype):
    # (n, c, h, w) -> (n//P, c, hp, pw): P items packed along lanes, then the
    # last two dims zero-padded up to (hp, pw) (multiples of 8 / 128).
    n, c, h, w = x.shape
    g = n // P
    x = x.astype(dtype)
    x = x.reshape(g, P, c, h, w).transpose(0, 2, 3, 1, 4).reshape(g, c, h, P * w)
    pad_h = hp - h
    pad_w = pw - P * w
    if pad_h or pad_w:
        x = jnp.pad(x, ((0, 0), (0, 0), (0, pad_h), (0, pad_w)))
    return x


def _unpack(y, n, P, h, w):
    # (g, hp, pw) -> (n, 1, h, w)
    g = n // P
    y = y[:, :h, :P * w]
    return y.reshape(g, h, P, w).transpose(0, 2, 1, 3).reshape(n, 1, h, w)


def _storage_dtype_for_device():
    # bf16 storage halves DMA / VMEM bytes and is native on the v6e/v7x VPU;
    # v5e (and older) has no bf16 VALU path, so keep f32 there.
    try:
        kind = jax.devices()[0].device_kind.lower()
    except Exception:
        return jnp.float32
    if ("v6" in kind) or ("v7" in kind) or ("7x" in kind):
        return jnp.bfloat16
    return jnp.float32


# ----------------------------------------------------------------------------
# Pallas kernel: SSIM (separable reflect-padded 3x3 pools via pltpu.roll) +
# OOB mask + channel mean + min over frames, one grid step per batch group.
# ----------------------------------------------------------------------------
def _make_residual_kernel(nf, c, h, w, hp, pw, approx_recip):
    C1 = 0.01 ** 2
    C2 = 0.03 ** 2
    inv_c = 1.0 / float(c)
    f32 = jnp.float32

    def kernel(*refs):
        key_ref = refs[0]
        warped_refs = refs[1:1 + nf]
        out_ref = refs[1 + nf]

        # Reflection / item-boundary masks, computed once and shared by every
        # pool call.  `col % w` makes the horizontal reflection per packed
        # item, which also prevents lane-packed items (and the zero padding)
        # from bleeding into each other through the rolls.
        row = jax.lax.broadcasted_iota(jnp.int32, (hp, pw), 0)
        col = jax.lax.broadcasted_iota(jnp.int32, (hp, pw), 1)
        is_top = row == 0
        is_bot = row == h - 1          # real (unpadded) bottom row
        cw = col % w
        is_lft = cw == 0
        is_rgt = cw == w - 1

        def vsum3(a):
            # 3-tap vertical (sublane) sum with 1-px reflection; rolls run on
            # the XLU slot, the where fix-up implements the reflection.
            up = pltpu.roll(a, 1, axis=0)        # a[i-1] (wraps at i=0)
            dn = pltpu.roll(a, hp - 1, axis=0)   # a[i+1] (wraps at i=hp-1)
            return a + jnp.where(is_top, dn, up) + jnp.where(is_bot, up, dn)

        def hsum3(a):
            # 3-tap horizontal (lane) sum with per-item 1-px reflection.
            lf = pltpu.roll(a, 1, axis=1)        # a[j-1]
            rt = pltpu.roll(a, pw - 1, axis=1)   # a[j+1]
            return a + jnp.where(is_lft, rt, lf) + jnp.where(is_rgt, lf, rt)

        def pool3(a, scale=1.0 / 9.0):
            # ReflectionPad2d(1) + AvgPool2d(3, 1), separable.
            return hsum3(vsum3(a)) * scale

        # --- keyframe-only work, hoisted out of the frame loop --------------
        ys, two_mu_ys, mu_y_sq_c1s, sig_y_c2s = [], [], [], []
        for ch in range(c):
            y = key_ref[ch].astype(f32) + 0.5            # (hp, pw)
            mu_y = pool3(y)
            mu_y_sq = mu_y * mu_y
            ys.append(y)
            two_mu_ys.append(mu_y + mu_y)
            mu_y_sq_c1s.append(mu_y_sq + C1)
            sig_y_c2s.append(pool3(y * y) - mu_y_sq + C2)

        res_min = jnp.full((hp, pw), jnp.inf, f32)
        all_mask = jnp.full((hp, pw), True)

        # --- per-frame SSIM, statically unrolled ----------------------------
        for f in range(nf):
            wref = warped_refs[f]
            wplanes = [wref[ch] for ch in range(c)]      # grid_sample(frame+1)

            # mask = any over channels (warped == 0)
            mask = wplanes[0] == 0
            for ch in range(1, c):
                mask = jnp.logical_or(mask, wplanes[ch] == 0)

            res_sum = jnp.zeros((hp, pw), f32)
            for ch in range(c):
                x = wplanes[ch].astype(f32) - 0.5        # warped_image -= 0.5
                y = ys[ch]
                mu_x = pool3(x)
                mu_x_sq = mu_x * mu_x
                sig_x = pool3(x * x) - mu_x_sq
                two_mu_xy = mu_x * two_mu_ys[ch]
                # 2*sigma_xy + C2 == 2*pool(x*y) - 2*mu_x*mu_y + C2
                two_sig_xy_c2 = pool3(x * y, scale=2.0 / 9.0) - two_mu_xy + C2

                ssim_n = (two_mu_xy + C1) * two_sig_xy_c2
                ssim_d = (mu_x_sq + mu_y_sq_c1s[ch]) * (sig_x + sig_y_c2s[ch])
                if approx_recip:
                    r = ssim_n * pl.reciprocal(ssim_d, approx=True)
                else:
                    r = ssim_n / ssim_d
                res_sum = res_sum + jnp.clip((1.0 - r) * 0.5, 0.0, 1.0)

            res_mean = jnp.where(mask, jnp.inf, res_sum * inv_c)
            res_min = jnp.minimum(res_min, res_mean)
            all_mask = jnp.logical_and(all_mask, mask)

        # residual_image[min(masks over frames)] = 0   (all frames masked)
        out_ref[...] = jnp.where(all_mask, 0.0, res_min)

    return kernel


def _residual_pallas(keyframe, warped_list, *, approx_recip=True,
                     storage_dtype=None):
    # keyframe: (n, c, h, w) f32; warped_list: nf x (n, c, h, w) f32
    # returns (n, 1, h, w) f32
    n, c, h, w = keyframe.shape
    nf = len(warped_list)
    if storage_dtype is None:
        storage_dtype = _storage_dtype_for_device()

    P = _lane_pack_factor(n, w)
    g = n // P
    hp = _round_up(h, 8)
    pw = _round_up(P * w, 128)

    key_p = _pack_and_pad(keyframe, P, hp, pw, storage_dtype)
    warped_p = [_pack_and_pad(wf, P, hp, pw, storage_dtype)
                for wf in warped_list]

    kernel = _make_residual_kernel(nf, c, h, w, hp, pw, approx_recip)

    in_specs = [pl.BlockSpec((None, c, hp, pw), lambda b: (b, 0, 0, 0))
                for _ in range(1 + nf)]
    out_specs = pl.BlockSpec((None, hp, pw), lambda b: (b, 0, 0))

    itemsize = jnp.dtype(storage_dtype).itemsize
    est = (2 * (1 + nf) * c * hp * pw * itemsize        # double-buffered inputs
           + 2 * hp * pw * 4                            # double-buffered output
           + (32 + 4 * c) * hp * pw * 4)                # live f32 temporaries
    vmem_limit = int(min(96 * 2 ** 20, max(32 * 2 ** 20, 2 * est)))

    out = pl.pallas_call(
        kernel,
        out_shape=jax.ShapeDtypeStruct((g, hp, pw), jnp.float32),
        grid_spec=pltpu.PrefetchScalarGridSpec(
            num_scalar_prefetch=0,
            grid=(g,),
            in_specs=in_specs,
            out_specs=out_specs,
        ),
        compiler_params=pltpu.CompilerParams(
            dimension_semantics=("parallel",),
            vmem_limit_bytes=vmem_limit),
    )(key_p, *warped_p)

    return _unpack(out, n, P, h, w)


# ----------------------------------------------------------------------------
# Full ResidualImage.forward
# ----------------------------------------------------------------------------
def residual_image_forward(keyframe, keyframe_pose, keyframe_intrinsics,
                           depths, frames, poses, intrinsics,
                           approx_recip=True):
    n, c, h, w = keyframe.shape
    nf = len(frames)

    # depths = (1 - d) * inv_depth_max + d * inv_depth_min  with (0, 1) -> d
    inv_depth_max, inv_depth_min = 0.0, 1.0
    d = (1.0 - depths) * inv_depth_max + depths * inv_depth_min

    # Backprojection: normalized [-1, 1] homogeneous pixel grid.
    yy, xx = jnp.meshgrid(jnp.linspace(-1.0, 1.0, h),
                          jnp.linspace(-1.0, 1.0, w), indexing="ij")
    coord = jnp.stack([xx.reshape(-1), yy.reshape(-1),
                       jnp.ones(h * w, jnp.float32)], axis=0)       # (3, h*w)
    ones = jnp.ones((n, 1, h * w), jnp.float32)

    inv_k = jnp.linalg.inv(keyframe_intrinsics)                     # (n, 4, 4)
    cam_points = inv_k[:, :3, :3] @ coord[None]                     # (n, 3, h*w)
    cam_points = cam_points / d.reshape(n, 1, -1)
    cam_points = jnp.concatenate([cam_points, ones], axis=1)        # (n, 4, h*w)

    warped_list = []
    for i in range(nf):
        t = jnp.linalg.inv(poses[i]) @ keyframe_pose                # (n, 4, 4)
        KT = intrinsics[i] @ t
        cam = KT[:, :3, :] @ cam_points                             # (n, 3, h*w)
        img_coord = cam[:, :2, :] / (cam[:, 2:3, :] + 1e-7)
        grid = img_coord.reshape(n, 2, h, w).transpose(0, 2, 3, 1)  # (n, h, w, 2)
        warped = grid_sample_bilinear_zeros(frames[i] + 1.0, grid)  # (n, c, h, w)
        warped_list.append(warped.astype(jnp.float32))

    return _residual_pallas(keyframe.astype(jnp.float32), warped_list,
                            approx_recip=approx_recip)


# ----------------------------------------------------------------------------
if __name__ == "__main__":
    key = jax.random.PRNGKey(0)
    n, c, h, w = 2, 4, 16, 16
    nf = 2
    keys = jax.random.split(key, 8)

    keyframe = jax.random.uniform(keys[0], (n, c, h, w), jnp.float32, -1.0, 1.0)
    depths = jax.random.uniform(keys[1], (n, 1, h, w), jnp.float32, 0.5, 1.5)

    def make_K(fx, fy, cx, cy):
        K = jnp.eye(4, dtype=jnp.float32)
        K = K.at[0, 0].set(fx).at[1, 1].set(fy).at[0, 2].set(cx).at[1, 2].set(cy)
        return jnp.broadcast_to(K, (n, 4, 4))

    keyframe_intrinsics = make_K(0.8, 0.9, 0.05, -0.05)
    keyframe_pose = jnp.broadcast_to(jnp.eye(4, dtype=jnp.float32), (n, 4, 4))

    frames, poses, intrinsics = [], [], []
    for i in range(nf):
        frames.append(jax.random.uniform(keys[2 + i], (n, c, h, w),
                                         jnp.float32, -1.0, 1.0))
        T = jnp.eye(4, dtype=jnp.float32)
        T = T.at[0, 3].set(0.08 * (i + 1)).at[1, 3].set(-0.05 * (i + 1)).at[2, 3].set(0.02)
        poses.append(jnp.broadcast_to(T, (n, 4, 4)))
        intrinsics.append(make_K(0.8, 0.9, 0.05, -0.05))

    out = residual_image_forward(keyframe, keyframe_pose, keyframe_intrinsics,
                                 depths, frames, poses, intrinsics)
    jax.block_until_ready(out)

    assert out.shape == (n, 1, h, w), out.shape
    assert bool(jnp.all(jnp.isfinite(out)))
    print("KERNEL_OK")
</pallas_src>

<mosaic_0001>
module attributes {stable_mosaic.version = 11 : i64} {
  func.func @kernel(%arg0: i32, %arg1: memref<1x4x16x128xf32, #tpu.memory_space<vmem>>, %arg2: memref<1x4x16x128xf32, #tpu.memory_space<vmem>>, %arg3: memref<1x4x16x128xf32, #tpu.memory_space<vmem>>, %arg4: memref<1x16x128xf32, #tpu.memory_space<vmem>>) attributes {dimension_semantics = [#tpu.dimension_semantics<parallel>], iteration_bounds = array<i64: 1>, scalar_prefetch = 0 : i64, scratch_operands = 0 : i64, tpu.core_type = #tpu.core_type<tc>, window_params = [{transform_indices = @transform_0, window_bounds = array<i64: 1, 4, 16, 128>}, {transform_indices = @transform_1, window_bounds = array<i64: 1, 4, 16, 128>}, {transform_indices = @transform_2, window_bounds = array<i64: 1, 4, 16, 128>}, {transform_indices = @transform_3, window_bounds = array<i64: 1, 16, 128>}]} {
    %0 = tpu.iota {dimensions = array<i32: 0>} : vector<16x128xi32>
    %1 = tpu.iota {dimensions = array<i32: 1>} : vector<16x128xi32>
    %c0_i32 = arith.constant 0 : i32
    %2 = vector.broadcast %c0_i32 : i32 to vector<16x128xi32>
    %3 = arith.cmpi eq, %0, %2 : vector<16x128xi32>
    %c15_i32 = arith.constant 15 : i32
    %4 = vector.broadcast %c15_i32 : i32 to vector<16x128xi32>
    %5 = arith.cmpi eq, %0, %4 : vector<16x128xi32>
    %c16_i32 = arith.constant 16 : i32
    %c0_i32_0 = arith.constant 0 : i32
    %6 = arith.cmpi eq, %c16_i32, %c0_i32_0 : i32
    %c1_i32 = arith.constant 1 : i32
    %7 = arith.select %6, %c1_i32, %c16_i32 : i32
    %8 = vector.broadcast %7 : i32 to vector<16x128xi32>
    %9 = arith.remsi %1, %8 : vector<16x128xi32>
    %c0_i32_1 = arith.constant 0 : i32
    %10 = vector.broadcast %c0_i32_1 : i32 to vector<16x128xi32>
    %11 = arith.cmpi ne, %9, %10 : vector<16x128xi32>
    %c0_i32_2 = arith.constant 0 : i32
    %12 = vector.broadcast %c0_i32_2 : i32 to vector<16x128xi32>
    %13 = arith.cmpi slt, %9, %12 : vector<16x128xi32>
    %c0_i32_3 = arith.constant 0 : i32
    %14 = arith.cmpi slt, %7, %c0_i32_3 : i32
    %15 = vector.broadcast %14 : i1 to vector<16x128xi1>
    %16 = vector.broadcast %15 : vector<16x128xi1> to vector<16x128xi1>
    %17 = arith.xori %13, %16 : vector<16x128xi1>
    %18 = arith.andi %17, %11 : vector<16x128xi1>
    %19 = vector.broadcast %7 : i32 to vector<16x128xi32>
    %20 = arith.addi %9, %19 : vector<16x128xi32>
    %21 = arith.select %18, %20, %9 : vector<16x128xi1>, vector<16x128xi32>
    %c0_i32_4 = arith.constant 0 : i32
    %22 = vector.broadcast %c0_i32_4 : i32 to vector<16x128xi32>
    %23 = arith.cmpi eq, %21, %22 : vector<16x128xi32>
    %c15_i32_5 = arith.constant 15 : i32
    %24 = vector.broadcast %c15_i32_5 : i32 to vector<16x128xi32>
    %25 = arith.cmpi eq, %21, %24 : vector<16x128xi32>
    %c0 = arith.constant 0 : index
    %c0_6 = arith.constant 0 : index
    %c0_7 = arith.constant 0 : index
    %c0_8 = arith.constant 0 : index
    %26 = vector.load %arg1[%c0, %c0_6, %c0_7, %c0_8] : memref<1x4x16x128xf32, #tpu.memory_space<vmem>>, vector<1x1x16x128xf32>
    %27 = vector.shape_cast %26 : vector<1x1x16x128xf32> to vector<16x128xf32>
    %cst = arith.constant 5.000000e-01 : f32
    %28 = vector.broadcast %cst : f32 to vector<16x128xf32>
    %29 = arith.addf %27, %28 : vector<16x128xf32>
    %c1_i32_9 = arith.constant 1 : i32
    %30 = tpu.dynamic_rotate %29 by %c1_i32_9 dim 0 : vector<16x128xf32>, i32 -> vector<16x128xf32>
    %c15_i32_10 = arith.constant 15 : i32
    %31 = tpu.dynamic_rotate %29 by %c15_i32_10 dim 0 : vector<16x128xf32>, i32 -> vector<16x128xf32>
    %32 = arith.select %3, %31, %30 : vector<16x128xi1>, vector<16x128xf32>
    %33 = arith.addf %29, %32 : vector<16x128xf32>
    %34 = arith.select %5, %30, %31 : vector<16x128xi1>, vector<16x128xf32>
    %35 = arith.addf %33, %34 : vector<16x128xf32>
    %c1_i32_11 = arith.constant 1 : i32
    %36 = tpu.dynamic_rotate %35 by %c1_i32_11 dim 1 : vector<16x128xf32>, i32 -> vector<16x128xf32>
    %c127_i32 = arith.constant 127 : i32
    %37 = tpu.dynamic_rotate %35 by %c127_i32 dim 1 : vector<16x128xf32>, i32 -> vector<16x128xf32>
    %38 = arith.select %23, %37, %36 : vector<16x128xi1>, vector<16x128xf32>
    %39 = arith.addf %35, %38 : vector<16x128xf32>
    %40 = arith.select %25, %36, %37 : vector<16x128xi1>, vector<16x128xf32>
    %41 = arith.addf %39, %40 : vector<16x128xf32>
    %cst_12 = arith.constant 0.111111112 : f32
    %42 = vector.broadcast %cst_12 : f32 to vector<16x128xf32>
    %43 = arith.mulf %41, %42 : vector<16x128xf32>
    %44 = arith.mulf %43, %43 : vector<16x128xf32>
    %45 = arith.addf %43, %43 : vector<16x128xf32>
    %cst_13 = arith.constant 9.99999974E-5 : f32
    %46 = vector.broadcast %cst_13 : f32 to vector<16x128xf32>
    %47 = arith.addf %44, %46 : vector<16x128xf32>
    %48 = arith.mulf %29, %29 : vector<16x128xf32>
    %c1_i32_14 = arith.constant 1 : i32
    %49 = tpu.dynamic_rotate %48 by %c1_i32_14 dim 0 : vector<16x128xf32>, i32 -> vector<16x128xf32>
    %c15_i32_15 = arith.constant 15 : i32
    %50 = tpu.dynamic_rotate %48 by %c15_i32_15 dim 0 : vector<16x128xf32>, i32 -> vector<16x128xf32>
    %51 = arith.select %3, %50, %49 : vector<16x128xi1>, vector<16x128xf32>
    %52 = arith.addf %48, %51 : vector<16x128xf32>
    %53 = arith.select %5, %49, %50 : vector<16x128xi1>, vector<16x128xf32>
    %54 = arith.addf %52, %53 : vector<16x128xf32>
    %c1_i32_16 = arith.constant 1 : i32
    %55 = tpu.dynamic_rotate %54 by %c1_i32_16 dim 1 : vector<16x128xf32>, i32 -> vector<16x128xf32>
    %c127_i32_17 = arith.constant 127 : i32
    %56 = tpu.dynamic_rotate %54 by %c127_i32_17 dim 1 : vector<16x128xf32>, i32 -> vector<16x128xf32>
    %57 = arith.select %23, %56, %55 : vector<16x128xi1>, vector<16x128xf32>
    %58 = arith.addf %54, %57 : vector<16x128xf32>
    %59 = arith.select %25, %55, %56 : vector<16x128xi1>, vector<16x128xf32>
    %60 = arith.addf %58, %59 : vector<16x128xf32>
    %cst_18 = arith.constant 0.111111112 : f32
    %61 = vector.broadcast %cst_18 : f32 to vector<16x128xf32>
    %62 = arith.mulf %60, %61 : vector<16x128xf32>
    %63 = arith.subf %62, %44 : vector<16x128xf32>
    %cst_19 = arith.constant 8.99999984E-4 : f32
    %64 = vector.broadcast %cst_19 : f32 to vector<16x128xf32>
    %65 = arith.addf %63, %64 : vector<16x128xf32>
    %c0_20 = arith.constant 0 : index
    %c1 = arith.constant 1 : index
    %c0_21 = arith.constant 0 : index
    %c0_22 = arith.constant 0 : index
    %66 = vector.load %arg1[%c0_20, %c1, %c0_21, %c0_22] : memref<1x4x16x128xf32, #tpu.memory_space<vmem>>, vector<1x1x16x128xf32>
    %67 = vector.shape_cast %66 : vector<1x1x16x128xf32> to vector<16x128xf32>
    %cst_23 = arith.constant 5.000000e-01 : f32
    %68 = vector.broadcast %cst_23 : f32 to vector<16x128xf32>
    %69 = arith.addf %67, %68 : vector<16x128xf32>
    %c1_i32_24 = arith.constant 1 : i32
    %70 = tpu.dynamic_rotate %69 by %c1_i32_24 dim 0 : vector<16x128xf32>, i32 -> vector<16x128xf32>
    %c15_i32_25 = arith.constant 15 : i32
    %71 = tpu.dynamic_rotate %69 by %c15_i32_25 dim 0 : vector<16x128xf32>, i32 -> vector<16x128xf32>
    %72 = arith.select %3, %71, %70 : vector<16x128xi1>, vector<16x128xf32>
    %73 = arith.addf %69, %72 : vector<16x128xf32>
    %74 = arith.select %5, %70, %71 : vector<16x128xi1>, vector<16x128xf32>
    %75 = arith.addf %73, %74 : vector<16x128xf32>
    %c1_i32_26 = arith.constant 1 : i32
    %76 = tpu.dynamic_rotate %75 by %c1_i32_26 dim 1 : vector<16x128xf32>, i32 -> vector<16x128xf32>
    %c127_i32_27 = arith.constant 127 : i32
    %77 = tpu.dynamic_rotate %75 by %c127_i32_27 dim 1 : vector<16x128xf32>, i32 -> vector<16x128xf32>
    %78 = arith.select %23, %77, %76 : vector<16x128xi1>, vector<16x128xf32>
    %79 = arith.addf %75, %78 : vector<16x128xf32>
    %80 = arith.select %25, %76, %77 : vector<16x128xi1>, vector<16x128xf32>
    %81 = arith.addf %79, %80 : vector<16x128xf32>
    %cst_28 = arith.constant 0.111111112 : f32
    %82 = vector.broadcast %cst_28 : f32 to vector<16x128xf32>
    %83 = arith.mulf %81, %82 : vector<16x128xf32>
    %84 = arith.mulf %83, %83 : vector<16x128xf32>
    %85 = arith.addf %83, %83 : vector<16x128xf32>
    %cst_29 = arith.constant 9.99999974E-5 : f32
    %86 = vector.broadcast %cst_29 : f32 to vector<16x128xf32>
    %87 = arith.addf %84, %86 : vector<16x128xf32>
    %88 = arith.mulf %69, %69 : vector<16x128xf32>
    %c1_i32_30 = arith.constant 1 : i32
    %89 = tpu.dynamic_rotate %88 by %c1_i32_30 dim 0 : vector<16x128xf32>, i32 -> vector<16x128xf32>
    %c15_i32_31 = arith.constant 15 : i32
    %90 = tpu.dynamic_rotate %88 by %c15_i32_31 dim 0 : vector<16x128xf32>, i32 -> vector<16x128xf32>
    %91 = arith.select %3, %90, %89 : vector<16x128xi1>, vector<16x128xf32>
    %92 = arith.addf %88, %91 : vector<16x128xf32>
    %93 = arith.select %5, %89, %90 : vector<16x128xi1>, vector<16x128xf32>
    %94 = arith.addf %92, %93 : vector<16x128xf32>
    %c1_i32_32 = arith.constant 1 : i32
    %95 = tpu.dynamic_rotate %94 by %c1_i32_32 dim 1 : vector<16x128xf32>, i32 -> vector<16x128xf32>
    %c127_i32_33 = arith.constant 127 : i32
    %96 = tpu.dynamic_rotate %94 by %c127_i32_33 dim 1 : vector<16x128xf32>, i32 -> vector<16x128xf32>
    %97 = arith.select %23, %96, %95 : vector<16x128xi1>, vector<16x128xf32>
    %98 = arith.addf %94, %97 : vector<16x128xf32>
    %99 = arith.select %25, %95, %96 : vector<16x128xi1>, vector<16x128xf32>
    %100 = arith.addf %98, %99 : vector<16x128xf32>
    %cst_34 = arith.constant 0.111111112 : f32
    %101 = vector.broadcast %cst_34 : f32 to vector<16x128xf32>
    %102 = arith.mulf %100, %101 : vector<16x128xf32>
    %103 = arith.subf %102, %84 : vector<16x128xf32>
    %cst_35 = arith.constant 8.99999984E-4 : f32
    %104 = vector.broadcast %cst_35 : f32 to vector<16x128xf32>
    %105 = arith.addf %103, %104 : vector<16x128xf32>
    %c0_36 = arith.constant 0 : index
    %c2 = arith.constant 2 : index
    %c0_37 = arith.constant 0 : index
    %c0_38 = arith.constant 0 : index
    %106 = vector.load %arg1[%c0_36, %c2, %c0_37, %c0_38] : memref<1x4x16x128xf32, #tpu.memory_space<vmem>>, vector<1x1x16x128xf32>
    %107 = vector.shape_cast %106 : vector<1x1x16x128xf32> to vector<16x128xf32>
    %cst_39 = arith.constant 5.000000e-01 : f32
    %108 = vector.broadcast %cst_39 : f32 to vector<16x128xf32>
    %109 = arith.addf %107, %108 : vector<16x128xf32>
    %c1_i32_40 = arith.constant 1 : i32
    %110 = tpu.dynamic_rotate %109 by %c1_i32_40 dim 0 : vector<16x128xf32>, i32 -> vector<16x128xf32>
    %c15_i32_41 = arith.constant 15 : i32
    %111 = tpu.dynamic_rotate %109 by %c15_i32_41 dim 0 : vector<16x128xf32>, i32 -> vector<16x128xf32>
    %112 = arith.select %3, %111, %110 : vector<16x128xi1>, vector<16x128xf32>
    %113 = arith.addf %109, %112 : vector<16x128xf32>
    %114 = arith.select %5, %110, %111 : vector<16x128xi1>, vector<16x128xf32>
    %115 = arith.addf %113, %114 : vector<16x128xf32>
    %c1_i32_42 = arith.constant 1 : i32
    %116 = tpu.dynamic_rotate %115 by %c1_i32_42 dim 1 : vector<16x128xf32>, i32 -> vector<16x128xf32>
    %c127_i32_43 = arith.constant 127 : i32
    %117 = tpu.dynamic_rotate %115 by %c127_i32_43 dim 1 : vector<16x128xf32>, i32 -> vector<16x128xf32>
    %118 = arith.select %23, %117, %116 : vector<16x128xi1>, vector<16x128xf32>
    %119 = arith.addf %115, %118 : vector<16x128xf32>
    %120 = arith.select %25, %116, %117 : vector<16x128xi1>, vector<16x128xf32>
    %121 = arith.addf %119, %120 : vector<16x128xf32>
    %cst_44 = arith.constant 0.111111112 : f32
    %122 = vector.broadcast %cst_44 : f32 to vector<16x128xf32>
    %123 = arith.mulf %121, %122 : vector<16x128xf32>
    %124 = arith.mulf %123, %123 : vector<16x128xf32>
    %125 = arith.addf %123, %123 : vector<16x128xf32>
    %cst_45 = arith.constant 9.99999974E-5 : f32
    %126 = vector.broadcast %cst_45 : f32 to vector<16x128xf32>
    %127 = arith.addf %124, %126 : vector<16x128xf32>
    %128 = arith.mulf %109, %109 : vector<16x128xf32>
    %c1_i32_46 = arith.constant 1 : i32
    %129 = tpu.dynamic_rotate %128 by %c1_i32_46 dim 0 : vector<16x128xf32>, i32 -> vector<16x128xf32>
    %c15_i32_47 = arith.constant 15 : i32
    %130 = tpu.dynamic_rotate %128 by %c15_i32_47 dim 0 : vector<16x128xf32>, i32 -> vector<16x128xf32>
    %131 = arith.select %3, %130, %129 : vector<16x128xi1>, vector<16x128xf32>
    %132 = arith.addf %128, %131 : vector<16x128xf32>
    %133 = arith.select %5, %129, %130 : vector<16x128xi1>, vector<16x128xf32>
    %134 = arith.addf %132, %133 : vector<16x128xf32>
    %c1_i32_48 = arith.constant 1 : i32
    %135 = tpu.dynamic_rotate %134 by %c1_i32_48 dim 1 : vector<16x128xf32>, i32 -> vector<16x128xf32>
    %c127_i32_49 = arith.constant 127 : i32
    %136 = tpu.dynamic_rotate %134 by %c127_i32_49 dim 1 : vector<16x128xf32>, i32 -> vector<16x128xf32>
    %137 = arith.select %23, %136, %135 : vector<16x128xi1>, vector<16x128xf32>
    %138 = arith.addf %134, %137 : vector<16x128xf32>
    %139 = arith.select %25, %135, %136 : vector<16x128xi1>, vector<16x128xf32>
    %140 = arith.addf %138, %139 : vector<16x128xf32>
    %cst_50 = arith.constant 0.111111112 : f32
    %141 = vector.broadcast %cst_50 : f32 to vector<16x128xf32>
    %142 = arith.mulf %140, %141 : vector<16x128xf32>
    %143 = arith.subf %142, %124 : vector<16x128xf32>
    %cst_51 = arith.constant 8.99999984E-4 : f32
    %144 = vector.broadcast %cst_51 : f32 to vector<16x128xf32>
    %145 = arith.addf %143, %144 : vector<16x128xf32>
    %c0_52 = arith.constant 0 : index
    %c3 = arith.constant 3 : index
    %c0_53 = arith.constant 0 : index
    %c0_54 = arith.constant 0 : index
    %146 = vector.load %arg1[%c0_52, %c3, %c0_53, %c0_54] : memref<1x4x16x128xf32, #tpu.memory_space<vmem>>, vector<1x1x16x128xf32>
    %147 = vector.shape_cast %146 : vector<1x1x16x128xf32> to vector<16x128xf32>
    %cst_55 = arith.constant 5.000000e-01 : f32
    %148 = vector.broadcast %cst_55 : f32 to vector<16x128xf32>
    %149 = arith.addf %147, %148 : vector<16x128xf32>
    %c1_i32_56 = arith.constant 1 : i32
    %150 = tpu.dynamic_rotate %149 by %c1_i32_56 dim 0 : vector<16x128xf32>, i32 -> vector<16x128xf32>
    %c15_i32_57 = arith.constant 15 : i32
    %151 = tpu.dynamic_rotate %149 by %c15_i32_57 dim 0 : vector<16x128xf32>, i32 -> vector<16x128xf32>
    %152 = arith.select %3, %151, %150 : vector<16x128xi1>, vector<16x128xf32>
    %153 = arith.addf %149, %152 : vector<16x128xf32>
    %154 = arith.select %5, %150, %151 : vector<16x128xi1>, vector<16x128xf32>
    %155 = arith.addf %153, %154 : vector<16x128xf32>
    %c1_i32_58 = arith.constant 1 : i32
    %156 = tpu.dynamic_rotate %155 by %c1_i32_58 dim 1 : vector<16x128xf32>, i32 -> vector<16x128xf32>
    %c127_i32_59 = arith.constant 127 : i32
    %157 = tpu.dynamic_rotate %155 by %c127_i32_59 dim 1 : vector<16x128xf32>, i32 -> vector<16x128xf32>
    %158 = arith.select %23, %157, %156 : vector<16x128xi1>, vector<16x128xf32>
    %159 = arith.addf %155, %158 : vector<16x128xf32>
    %160 = arith.select %25, %156, %157 : vector<16x128xi1>, vector<16x128xf32>
    %161 = arith.addf %159, %160 : vector<16x128xf32>
    %cst_60 = arith.constant 0.111111112 : f32
    %162 = vector.broadcast %cst_60 : f32 to vector<16x128xf32>
    %163 = arith.mulf %161, %162 : vector<16x128xf32>
    %164 = arith.mulf %163, %163 : vector<16x128xf32>
    %165 = arith.addf %163, %163 : vector<16x128xf32>
    %cst_61 = arith.constant 9.99999974E-5 : f32
    %166 = vector.broadcast %cst_61 : f32 to vector<16x128xf32>
    %167 = arith.addf %164, %166 : vector<16x128xf32>
    %168 = arith.mulf %149, %149 : vector<16x128xf32>
    %c1_i32_62 = arith.constant 1 : i32
    %169 = tpu.dynamic_rotate %168 by %c1_i32_62 dim 0 : vector<16x128xf32>, i32 -> vector<16x128xf32>
    %c15_i32_63 = arith.constant 15 : i32
    %170 = tpu.dynamic_rotate %168 by %c15_i32_63 dim 0 : vector<16x128xf32>, i32 -> vector<16x128xf32>
    %171 = arith.select %3, %170, %169 : vector<16x128xi1>, vector<16x128xf32>
    %172 = arith.addf %168, %171 : vector<16x128xf32>
    %173 = arith.select %5, %169, %170 : vector<16x128xi1>, vector<16x128xf32>
    %174 = arith.addf %172, %173 : vector<16x128xf32>
    %c1_i32_64 = arith.constant 1 : i32
    %175 = tpu.dynamic_rotate %174 by %c1_i32_64 dim 1 : vector<16x128xf32>, i32 -> vector<16x128xf32>
    %c127_i32_65 = arith.constant 127 : i32
    %176 = tpu.dynamic_rotate %174 by %c127_i32_65 dim 1 : vector<16x128xf32>, i32 -> vector<16x128xf32>
    %177 = arith.select %23, %176, %175 : vector<16x128xi1>, vector<16x128xf32>
    %178 = arith.addf %174, %177 : vector<16x128xf32>
    %179 = arith.select %25, %175, %176 : vector<16x128xi1>, vector<16x128xf32>
    %180 = arith.addf %178, %179 : vector<16x128xf32>
    %cst_66 = arith.constant 0.111111112 : f32
    %181 = vector.broadcast %cst_66 : f32 to vector<16x128xf32>
    %182 = arith.mulf %180, %181 : vector<16x128xf32>
    %183 = arith.subf %182, %164 : vector<16x128xf32>
    %cst_67 = arith.constant 8.99999984E-4 : f32
    %184 = vector.broadcast %cst_67 : f32 to vector<16x128xf32>
    %185 = arith.addf %183, %184 : vector<16x128xf32>
    %cst_68 = arith.constant 0x7F800000 : f32
    %186 = vector.broadcast %cst_68 : f32 to vector<16x128xf32>
    %true = arith.constant true
    %187 = vector.broadcast %true : i1 to vector<16x128xi1>
    %c0_69 = arith.constant 0 : index
    %c0_70 = arith.constant 0 : index
    %c0_71 = arith.constant 0 : index
    %c0_72 = arith.constant 0 : index
    %188 = vector.load %arg2[%c0_69, %c0_70, %c0_71, %c0_72] : memref<1x4x16x128xf32, #tpu.memory_space<vmem>>, vector<1x1x16x128xf32>
    %189 = vector.shape_cast %188 : vector<1x1x16x128xf32> to vector<16x128xf32>
    %c0_73 = arith.constant 0 : index
    %c1_74 = arith.constant 1 : index
    %c0_75 = arith.constant 0 : index
    %c0_76 = arith.constant 0 : index
    %190 = vector.load %arg2[%c0_73, %c1_74, %c0_75, %c0_76] : memref<1x4x16x128xf32, #tpu.memory_space<vmem>>, vector<1x1x16x128xf32>
    %191 = vector.shape_cast %190 : vector<1x1x16x128xf32> to vector<16x128xf32>
    %c0_77 = arith.constant 0 : index
    %c2_78 = arith.constant 2 : index
    %c0_79 = arith.constant 0 : index
    %c0_80 = arith.constant 0 : index
    %192 = vector.load %arg2[%c0_77, %c2_78, %c0_79, %c0_80] : memref<1x4x16x128xf32, #tpu.memory_space<vmem>>, vector<1x1x16x128xf32>
    %193 = vector.shape_cast %192 : vector<1x1x16x128xf32> to vector<16x128xf32>
    %c0_81 = arith.constant 0 : index
    %c3_82 = arith.constant 3 : index
    %c0_83 = arith.constant 0 : index
    %c0_84 = arith.constant 0 : index
    %194 = vector.load %arg2[%c0_81, %c3_82, %c0_83, %c0_84] : memref<1x4x16x128xf32, #tpu.memory_space<vmem>>, vector<1x1x16x128xf32>
    %195 = vector.shape_cast %194 : vector<1x1x16x128xf32> to vector<16x128xf32>
    %cst_85 = arith.constant 0.000000e+00 : f32
    %196 = vector.broadcast %cst_85 : f32 to vector<16x128xf32>
    %197 = arith.cmpf oeq, %189, %196 : vector<16x128xf32>
    %cst_86 = arith.constant 0.000000e+00 : f32
    %198 = vector.broadcast %cst_86 : f32 to vector<16x128xf32>
    %199 = arith.cmpf oeq, %191, %198 : vector<16x128xf32>
    %200 = arith.ori %197, %199 : vector<16x128xi1>
    %cst_87 = arith.constant 0.000000e+00 : f32
    %201 = vector.broadcast %cst_87 : f32 to vector<16x128xf32>
    %202 = arith.cmpf oeq, %193, %201 : vector<16x128xf32>
    %203 = arith.ori %200, %202 : vector<16x128xi1>
    %cst_88 = arith.constant 0.000000e+00 : f32
    %204 = vector.broadcast %cst_88 : f32 to vector<16x128xf32>
    %205 = arith.cmpf oeq, %195, %204 : vector<16x128xf32>
    %206 = arith.ori %203, %205 : vector<16x128xi1>
    %cst_89 = arith.constant 0.000000e+00 : f32
    %207 = vector.broadcast %cst_89 : f32 to vector<16x128xf32>
    %cst_90 = arith.constant 5.000000e-01 : f32
    %208 = vector.broadcast %cst_90 : f32 to vector<16x128xf32>
    %209 = arith.subf %189, %208 : vector<16x128xf32>
    %c1_i32_91 = arith.constant 1 : i32
    %210 = tpu.dynamic_rotate %209 by %c1_i32_91 dim 0 : vector<16x128xf32>, i32 -> vector<16x128xf32>
    %c15_i32_92 = arith.constant 15 : i32
    %211 = tpu.dynamic_rotate %209 by %c15_i32_92 dim 0 : vector<16x128xf32>, i32 -> vector<16x128xf32>
    %212 = arith.select %3, %211, %210 : vector<16x128xi1>, vector<16x128xf32>
    %213 = arith.addf %209, %212 : vector<16x128xf32>
    %214 = arith.select %5, %210, %211 : vector<16x128xi1>, vector<16x128xf32>
    %215 = arith.addf %213, %214 : vector<16x128xf32>
    %c1_i32_93 = arith.constant 1 : i32
    %216 = tpu.dynamic_rotate %215 by %c1_i32_93 dim 1 : vector<16x128xf32>, i32 -> vector<16x128xf32>
    %c127_i32_94 = arith.constant 127 : i32
    %217 = tpu.dynamic_rotate %215 by %c127_i32_94 dim 1 : vector<16x128xf32>, i32 -> vector<16x128xf32>
    %218 = arith.select %23, %217, %216 : vector<16x128xi1>, vector<16x128xf32>
    %219 = arith.addf %215, %218 : vector<16x128xf32>
    %220 = arith.select %25, %216, %217 : vector<16x128xi1>, vector<16x128xf32>
    %221 = arith.addf %219, %220 : vector<16x128xf32>
    %cst_95 = arith.constant 0.111111112 : f32
    %222 = vector.broadcast %cst_95 : f32 to vector<16x128xf32>
    %223 = arith.mulf %221, %222 : vector<16x128xf32>
    %224 = arith.mulf %223, %223 : vector<16x128xf32>
    %225 = arith.mulf %209, %209 : vector<16x128xf32>
    %c1_i32_96 = arith.constant 1 : i32
    %226 = tpu.dynamic_rotate %225 by %c1_i32_96 dim 0 : vector<16x128xf32>, i32 -> vector<16x128xf32>
    %c15_i32_97 = arith.constant 15 : i32
    %227 = tpu.dynamic_rotate %225 by %c15_i32_97 dim 0 : vector<16x128xf32>, i32 -> vector<16x128xf32>
    %228 = arith.select %3, %227, %226 : vector<16x128xi1>, vector<16x128xf32>
    %229 = arith.addf %225, %228 : vector<16x128xf32>
    %230 = arith.select %5, %226, %227 : vector<16x128xi1>, vector<16x128xf32>
    %231 = arith.addf %229, %230 : vector<16x128xf32>
    %c1_i32_98 = arith.constant 1 : i32
    %232 = tpu.dynamic_rotate %231 by %c1_i32_98 dim 1 : vector<16x128xf32>, i32 -> vector<16x128xf32>
    %c127_i32_99 = arith.constant 127 : i32
    %233 = tpu.dynamic_rotate %231 by %c127_i32_99 dim 1 : vector<16x128xf32>, i32 -> vector<16x128xf32>
    %234 = arith.select %23, %233, %232 : vector<16x128xi1>, vector<16x128xf32>
    %235 = arith.addf %231, %234 : vector<16x128xf32>
    %236 = arith.select %25, %232, %233 : vector<16x128xi1>, vector<16x128xf32>
    %237 = arith.addf %235, %236 : vector<16x128xf32>
    %cst_100 = arith.constant 0.111111112 : f32
    %238 = vector.broadcast %cst_100 : f32 to vector<16x128xf32>
    %239 = arith.mulf %237, %238 : vector<16x128xf32>
    %240 = arith.subf %239, %224 : vector<16x128xf32>
    %241 = arith.mulf %223, %45 : vector<16x128xf32>
    %242 = arith.mulf %209, %29 : vector<16x128xf32>
    %c1_i32_101 = arith.constant 1 : i32
    %243 = tpu.dynamic_rotate %242 by %c1_i32_101 dim 0 : vector<16x128xf32>, i32 -> vector<16x128xf32>
    %c15_i32_102 = arith.constant 15 : i32
    %244 = tpu.dynamic_rotate %242 by %c15_i32_102 dim 0 : vector<16x128xf32>, i32 -> vector<16x128xf32>
    %245 = arith.select %3, %244, %243 : vector<16x128xi1>, vector<16x128xf32>
    %246 = arith.addf %242, %245 : vector<16x128xf32>
    %247 = arith.select %5, %243, %244 : vector<16x128xi1>, vector<16x128xf32>
    %248 = arith.addf %246, %247 : vector<16x128xf32>
    %c1_i32_103 = arith.constant 1 : i32
    %249 = tpu.dynamic_rotate %248 by %c1_i32_103 dim 1 : vector<16x128xf32>, i32 -> vector<16x128xf32>
    %c127_i32_104 = arith.constant 127 : i32
    %250 = tpu.dynamic_rotate %248 by %c127_i32_104 dim 1 : vector<16x128xf32>, i32 -> vector<16x128xf32>
    %251 = arith.select %23, %250, %249 : vector<16x128xi1>, vector<16x128xf32>
    %252 = arith.addf %248, %251 : vector<16x128xf32>
    %253 = arith.select %25, %249, %250 : vector<16x128xi1>, vector<16x128xf32>
    %254 = arith.addf %252, %253 : vector<16x128xf32>
    %cst_105 = arith.constant 0.222222224 : f32
    %255 = vector.broadcast %cst_105 : f32 to vector<16x128xf32>
    %256 = arith.mulf %254, %255 : vector<16x128xf32>
    %257 = arith.subf %256, %241 : vector<16x128xf32>
    %cst_106 = arith.constant 8.99999984E-4 : f32
    %258 = vector.broadcast %cst_106 : f32 to vector<16x128xf32>
    %259 = arith.addf %257, %258 : vector<16x128xf32>
    %cst_107 = arith.constant 9.99999974E-5 : f32
    %260 = vector.broadcast %cst_107 : f32 to vector<16x128xf32>
    %261 = arith.addf %241, %260 : vector<16x128xf32>
    %262 = arith.mulf %261, %259 : vector<16x128xf32>
    %263 = arith.addf %224, %47 : vector<16x128xf32>
    %264 = arith.addf %240, %65 : vector<16x128xf32>
    %265 = arith.mulf %263, %264 : vector<16x128xf32>
    %266 = tpu.reciprocal %265 {approx = true} : vector<16x128xf32> -> vector<16x128xf32>
    %267 = arith.mulf %262, %266 : vector<16x128xf32>
    %cst_108 = arith.constant 1.000000e+00 : f32
    %268 = vector.broadcast %cst_108 : f32 to vector<16x128xf32>
    %269 = arith.subf %268, %267 : vector<16x128xf32>
    %cst_109 = arith.constant 5.000000e-01 : f32
    %270 = vector.broadcast %cst_109 : f32 to vector<16x128xf32>
    %271 = arith.mulf %269, %270 : vector<16x128xf32>
    %cst_110 = arith.constant 0.000000e+00 : f32
    %cst_111 = arith.constant 1.000000e+00 : f32
    %272 = vector.broadcast %cst_110 : f32 to vector<16x128xf32>
    %273 = arith.maximumf %272, %271 : vector<16x128xf32>
    %274 = vector.broadcast %cst_111 : f32 to vector<16x128xf32>
    %275 = arith.minimumf %274, %273 : vector<16x128xf32>
    %276 = arith.addf %207, %275 : vector<16x128xf32>
    %cst_112 = arith.constant 5.000000e-01 : f32
    %277 = vector.broadcast %cst_112 : f32 to vector<16x128xf32>
    %278 = arith.subf %191, %277 : vector<16x128xf32>
    %c1_i32_113 = arith.constant 1 : i32
    %279 = tpu.dynamic_rotate %278 by %c1_i32_113 dim 0 : vector<16x128xf32>, i32 -> vector<16x128xf32>
    %c15_i32_114 = arith.constant 15 : i32
    %280 = tpu.dynamic_rotate %278 by %c15_i32_114 dim 0 : vector<16x128xf32>, i32 -> vector<16x128xf32>
    %281 = arith.select %3, %280, %279 : vector<16x128xi1>, vector<16x128xf32>
    %282 = arith.addf %278, %281 : vector<16x128xf32>
    %283 = arith.select %5, %279, %280 : vector<16x128xi1>, vector<16x128xf32>
    %284 = arith.addf %282, %283 : vector<16x128xf32>
    %c1_i32_115 = arith.constant 1 : i32
    %285 = tpu.dynamic_rotate %284 by %c1_i32_115 dim 1 : vector<16x128xf32>, i32 -> vector<16x128xf32>
    %c127_i32_116 = arith.constant 127 : i32
    %286 = tpu.dynamic_rotate %284 by %c127_i32_116 dim 1 : vector<16x128xf32>, i32 -> vector<16x128xf32>
    %287 = arith.select %23, %286, %285 : vector<16x128xi1>, vector<16x128xf32>
    %288 = arith.addf %284, %287 : vector<16x128xf32>
    %289 = arith.select %25, %285, %286 : vector<16x128xi1>, vector<16x128xf32>
    %290 = arith.addf %288, %289 : vector<16x128xf32>
    %cst_117 = arith.constant 0.111111112 : f32
    %291 = vector.broadcast %cst_117 : f32 to vector<16x128xf32>
    %292 = arith.mulf %290, %291 : vector<16x128xf32>
    %293 = arith.mulf %292, %292 : vector<16x128xf32>
    %294 = arith.mulf %278, %278 : vector<16x128xf32>
    %c1_i32_118 = arith.constant 1 : i32
    %295 = tpu.dynamic_rotate %294 by %c1_i32_118 dim 0 : vector<16x128xf32>, i32 -> vector<16x128xf32>
    %c15_i32_119 = arith.constant 15 : i32
    %296 = tpu.dynamic_rotate %294 by %c15_i32_119 dim 0 : vector<16x128xf32>, i32 -> vector<16x128xf32>
    %297 = arith.select %3, %296, %295 : vector<16x128xi1>, vector<16x128xf32>
    %298 = arith.addf %294, %297 : vector<16x128xf32>
    %299 = arith.select %5, %295, %296 : vector<16x128xi1>, vector<16x128xf32>
    %300 = arith.addf %298, %299 : vector<16x128xf32>
    %c1_i32_120 = arith.constant 1 : i32
    %301 = tpu.dynamic_rotate %300 by %c1_i32_120 dim 1 : vector<16x128xf32>, i32 -> vector<16x128xf32>
    %c127_i32_121 = arith.constant 127 : i32
    %302 = tpu.dynamic_rotate %300 by %c127_i32_121 dim 1 : vector<16x128xf32>, i32 -> vector<16x128xf32>
    %303 = arith.select %23, %302, %301 : vector<16x128xi1>, vector<16x128xf32>
    %304 = arith.addf %300, %303 : vector<16x128xf32>
    %305 = arith.select %25, %301, %302 : vector<16x128xi1>, vector<16x128xf32>
    %306 = arith.addf %304, %305 : vector<16x128xf32>
    %cst_122 = arith.constant 0.111111112 : f32
    %307 = vector.broadcast %cst_122 : f32 to vector<16x128xf32>
    %308 = arith.mulf %306, %307 : vector<16x128xf32>
    %309 = arith.subf %308, %293 : vector<16x128xf32>
    %310 = arith.mulf %292, %85 : vector<16x128xf32>
    %311 = arith.mulf %278, %69 : vector<16x128xf32>
    %c1_i32_123 = arith.constant 1 : i32
    %312 = tpu.dynamic_rotate %311 by %c1_i32_123 dim 0 : vector<16x128xf32>, i32 -> vector<16x128xf32>
    %c15_i32_124 = arith.constant 15 : i32
    %313 = tpu.dynamic_rotate %311 by %c15_i32_124 dim 0 : vector<16x128xf32>, i32 -> vector<16x128xf32>
    %314 = arith.select %3, %313, %312 : vector<16x128xi1>, vector<16x128xf32>
    %315 = arith.addf %311, %314 : vector<16x128xf32>
    %316 = arith.select %5, %312, %313 : vector<16x128xi1>, vector<16x128xf32>
    %317 = arith.addf %315, %316 : vector<16x128xf32>
    %c1_i32_125 = arith.constant 1 : i32
    %318 = tpu.dynamic_rotate %317 by %c1_i32_125 dim 1 : vector<16x128xf32>, i32 -> vector<16x128xf32>
    %c127_i32_126 = arith.constant 127 : i32
    %319 = tpu.dynamic_rotate %317 by %c127_i32_126 dim 1 : vector<16x128xf32>, i32 -> vector<16x128xf32>
    %320 = arith.select %23, %319, %318 : vector<16x128xi1>, vector<16x128xf32>
    %321 = arith.addf %317, %320 : vector<16x128xf32>
    %322 = arith.select %25, %318, %319 : vector<16x128xi1>, vector<16x128xf32>
    %323 = arith.addf %321, %322 : vector<16x128xf32>
    %cst_127 = arith.constant 0.222222224 : f32
    %324 = vector.broadcast %cst_127 : f32 to vector<16x128xf32>
    %325 = arith.mulf %323, %324 : vector<16x128xf32>
    %326 = arith.subf %325, %310 : vector<16x128xf32>
    %cst_128 = arith.constant 8.99999984E-4 : f32
    %327 = vector.broadcast %cst_128 : f32 to vector<16x128xf32>
    %328 = arith.addf %326, %327 : vector<16x128xf32>
    %cst_129 = arith.constant 9.99999974E-5 : f32
    %329 = vector.broadcast %cst_129 : f32 to vector<16x128xf32>
    %330 = arith.addf %310, %329 : vector<16x128xf32>
    %331 = arith.mulf %330, %328 : vector<16x128xf32>
    %332 = arith.addf %293, %87 : vector<16x128xf32>
    %333 = arith.addf %309, %105 : vector<16x128xf32>
    %334 = arith.mulf %332, %333 : vector<16x128xf32>
    %335 = tpu.reciprocal %334 {approx = true} : vector<16x128xf32> -> vector<16x128xf32>
    %336 = arith.mulf %331, %335 : vector<16x128xf32>
    %cst_130 = arith.constant 1.000000e+00 : f32
    %337 = vector.broadcast %cst_130 : f32 to vector<16x128xf32>
    %338 = arith.subf %337, %336 : vector<16x128xf32>
    %cst_131 = arith.constant 5.000000e-01 : f32
    %339 = vector.broadcast %cst_131 : f32 to vector<16x128xf32>
    %340 = arith.mulf %338, %339 : vector<16x128xf32>
    %cst_132 = arith.constant 0.000000e+00 : f32
    %cst_133 = arith.constant 1.000000e+00 : f32
    %341 = vector.broadcast %cst_132 : f32 to vector<16x128xf32>
    %342 = arith.maximumf %341, %340 : vector<16x128xf32>
    %343 = vector.broadcast %cst_133 : f32 to vector<16x128xf32>
    %344 = arith.minimumf %343, %342 : vector<16x128xf32>
    %345 = arith.addf %276, %344 : vector<16x128xf32>
    %cst_134 = arith.constant 5.000000e-01 : f32
    %346 = vector.broadcast %cst_134 : f32 to vector<16x128xf32>
    %347 = arith.subf %193, %346 : vector<16x128xf32>
    %c1_i32_135 = arith.constant 1 : i32
    %348 = tpu.dynamic_rotate %347 by %c1_i32_135 dim 0 : vector<16x128xf32>, i32 -> vector<16x128xf32>
    %c15_i32_136 = arith.constant 15 : i32
    %349 = tpu.dynamic_rotate %347 by %c15_i32_136 dim 0 : vector<16x128xf32>, i32 -> vector<16x128xf32>
    %350 = arith.select %3, %349, %348 : vector<16x128xi1>, vector<16x128xf32>
    %351 = arith.addf %347, %350 : vector<16x128xf32>
    %352 = arith.select %5, %348, %349 : vector<16x128xi1>, vector<16x128xf32>
    %353 = arith.addf %351, %352 : vector<16x128xf32>
    %c1_i32_137 = arith.constant 1 : i32
    %354 = tpu.dynamic_rotate %353 by %c1_i32_137 dim 1 : vector<16x128xf32>, i32 -> vector<16x128xf32>
    %c127_i32_138 = arith.constant 127 : i32
    %355 = tpu.dynamic_rotate %353 by %c127_i32_138 dim 1 : vector<16x128xf32>, i32 -> vector<16x128xf32>
    %356 = arith.select %23, %355, %354 : vector<16x128xi1>, vector<16x128xf32>
    %357 = arith.addf %353, %356 : vector<16x128xf32>
    %358 = arith.select %25, %354, %355 : vector<16x128xi1>, vector<16x128xf32>
    %359 = arith.addf %357, %358 : vector<16x128xf32>
    %cst_139 = arith.constant 0.111111112 : f32
    %360 = vector.broadcast %cst_139 : f32 to vector<16x128xf32>
    %361 = arith.mulf %359, %360 : vector<16x128xf32>
    %362 = arith.mulf %361, %361 : vector<16x128xf32>
    %363 = arith.mulf %347, %347 : vector<16x128xf32>
    %c1_i32_140 = arith.constant 1 : i32
    %364 = tpu.dynamic_rotate %363 by %c1_i32_140 dim 0 : vector<16x128xf32>, i32 -> vector<16x128xf32>
    %c15_i32_141 = arith.constant 15 : i32
    %365 = tpu.dynamic_rotate %363 by %c15_i32_141 dim 0 : vector<16x128xf32>, i32 -> vector<16x128xf32>
    %366 = arith.select %3, %365, %364 : vector<16x128xi1>, vector<16x128xf32>
    %367 = arith.addf %363, %366 : vector<16x128xf32>
    %368 = arith.select %5, %364, %365 : vector<16x128xi1>, vector<16x128xf32>
    %369 = arith.addf %367, %368 : vector<16x128xf32>
    %c1_i32_142 = arith.constant 1 : i32
    %370 = tpu.dynamic_rotate %369 by %c1_i32_142 dim 1 : vector<16x128xf32>, i32 -> vector<16x128xf32>
    %c127_i32_143 = arith.constant 127 : i32
    %371 = tpu.dynamic_rotate %369 by %c127_i32_143 dim 1 : vector<16x128xf32>, i32 -> vector<16x128xf32>
    %372 = arith.select %23, %371, %370 : vector<16x128xi1>, vector<16x128xf32>
    %373 = arith.addf %369, %372 : vector<16x128xf32>
    %374 = arith.select %25, %370, %371 : vector<16x128xi1>, vector<16x128xf32>
    %375 = arith.addf %373, %374 : vector<16x128xf32>
    %cst_144 = arith.constant 0.111111112 : f32
    %376 = vector.broadcast %cst_144 : f32 to vector<16x128xf32>
    %377 = arith.mulf %375, %376 : vector<16x128xf32>
    %378 = arith.subf %377, %362 : vector<16x128xf32>
    %379 = arith.mulf %361, %125 : vector<16x128xf32>
    %380 = arith.mulf %347, %109 : vector<16x128xf32>
    %c1_i32_145 = arith.constant 1 : i32
    %381 = tpu.dynamic_rotate %380 by %c1_i32_145 dim 0 : vector<16x128xf32>, i32 -> vector<16x128xf32>
    %c15_i32_146 = arith.constant 15 : i32
    %382 = tpu.dynamic_rotate %380 by %c15_i32_146 dim 0 : vector<16x128xf32>, i32 -> vector<16x128xf32>
    %383 = arith.select %3, %382, %381 : vector<16x128xi1>, vector<16x128xf32>
    %384 = arith.addf %380, %383 : vector<16x128xf32>
    %385 = arith.select %5, %381, %382 : vector<16x128xi1>, vector<16x128xf32>
    %386 = arith.addf %384, %385 : vector<16x128xf32>
    %c1_i32_147 = arith.constant 1 : i32
    %387 = tpu.dynamic_rotate %386 by %c1_i32_147 dim 1 : vector<16x128xf32>, i32 -> vector<16x128xf32>
    %c127_i32_148 = arith.constant 127 : i32
    %388 = tpu.dynamic_rotate %386 by %c127_i32_148 dim 1 : vector<16x128xf32>, i32 -> vector<16x128xf32>
    %389 = arith.select %23, %388, %387 : vector<16x128xi1>, vector<16x128xf32>
    %390 = arith.addf %386, %389 : vector<16x128xf32>
    %391 = arith.select %25, %387, %388 : vector<16x128xi1>, vector<16x128xf32>
    %392 = arith.addf %390, %391 : vector<16x128xf32>
    %cst_149 = arith.constant 0.222222224 : f32
    %393 = vector.broadcast %cst_149 : f32 to vector<16x128xf32>
    %394 = arith.mulf %392, %393 : vector<16x128xf32>
    %395 = arith.subf %394, %379 : vector<16x128xf32>
    %cst_150 = arith.constant 8.99999984E-4 : f32
    %396 = vector.broadcast %cst_150 : f32 to vector<16x128xf32>
    %397 = arith.addf %395, %396 : vector<16x128xf32>
    %cst_151 = arith.constant 9.99999974E-5 : f32
    %398 = vector.broadcast %cst_151 : f32 to vector<16x128xf32>
    %399 = arith.addf %379, %398 : vector<16x128xf32>
    %400 = arith.mulf %399, %397 : vector<16x128xf32>
    %401 = arith.addf %362, %127 : vector<16x128xf32>
    %402 = arith.addf %378, %145 : vector<16x128xf32>
    %403 = arith.mulf %401, %402 : vector<16x128xf32>
    %404 = tpu.reciprocal %403 {approx = true} : vector<16x128xf32> -> vector<16x128xf32>
    %405 = arith.mulf %400, %404 : vector<16x128xf32>
    %cst_152 = arith.constant 1.000000e+00 : f32
    %406 = vector.broadcast %cst_152 : f32 to vector<16x128xf32>
    %407 = arith.subf %406, %405 : vector<16x128xf32>
    %cst_153 = arith.constant 5.000000e-01 : f32
    %408 = vector.broadcast %cst_153 : f32 to vector<16x128xf32>
    %409 = arith.mulf %407, %408 : vector<16x128xf32>
    %cst_154 = arith.constant 0.000000e+00 : f32
    %cst_155 = arith.constant 1.000000e+00 : f32
    %410 = vector.broadcast %cst_154 : f32 to vector<16x128xf32>
    %411 = arith.maximumf %410, %409 : vector<16x128xf32>
    %412 = vector.broadcast %cst_155 : f32 to vector<16x128xf32>
    %413 = arith.minimumf %412, %411 : vector<16x128xf32>
    %414 = arith.addf %345, %413 : vector<16x128xf32>
    %cst_156 = arith.constant 5.000000e-01 : f32
    %415 = vector.broadcast %cst_156 : f32 to vector<16x128xf32>
    %416 = arith.subf %195, %415 : vector<16x128xf32>
    %c1_i32_157 = arith.constant 1 : i32
    %417 = tpu.dynamic_rotate %416 by %c1_i32_157 dim 0 : vector<16x128xf32>, i32 -> vector<16x128xf32>
    %c15_i32_158 = arith.constant 15 : i32
    %418 = tpu.dynamic_rotate %416 by %c15_i32_158 dim 0 : vector<16x128xf32>, i32 -> vector<16x128xf32>
    %419 = arith.select %3, %418, %417 : vector<16x128xi1>, vector<16x128xf32>
    %420 = arith.addf %416, %419 : vector<16x128xf32>
    %421 = arith.select %5, %417, %418 : vector<16x128xi1>, vector<16x128xf32>
    %422 = arith.addf %420, %421 : vector<16x128xf32>
    %c1_i32_159 = arith.constant 1 : i32
    %423 = tpu.dynamic_rotate %422 by %c1_i32_159 dim 1 : vector<16x128xf32>, i32 -> vector<16x128xf32>
    %c127_i32_160 = arith.constant 127 : i32
    %424 = tpu.dynamic_rotate %422 by %c127_i32_160 dim 1 : vector<16x128xf32>, i32 -> vector<16x128xf32>
    %425 = arith.select %23, %424, %423 : vector<16x128xi1>, vector<16x128xf32>
    %426 = arith.addf %422, %425 : vector<16x128xf32>
    %427 = arith.select %25, %423, %424 : vector<16x128xi1>, vector<16x128xf32>
    %428 = arith.addf %426, %427 : vector<16x128xf32>
    %cst_161 = arith.constant 0.111111112 : f32
    %429 = vector.broadcast %cst_161 : f32 to vector<16x128xf32>
    %430 = arith.mulf %428, %429 : vector<16x128xf32>
    %431 = arith.mulf %430, %430 : vector<16x128xf32>
    %432 = arith.mulf %416, %416 : vector<16x128xf32>
    %c1_i32_162 = arith.constant 1 : i32
    %433 = tpu.dynamic_rotate %432 by %c1_i32_162 dim 0 : vector<16x128xf32>, i32 -> vector<16x128xf32>
    %c15_i32_163 = arith.constant 15 : i32
    %434 = tpu.dynamic_rotate %432 by %c15_i32_163 dim 0 : vector<16x128xf32>, i32 -> vector<16x128xf32>
    %435 = arith.select %3, %434, %433 : vector<16x128xi1>, vector<16x128xf32>
    %436 = arith.addf %432, %435 : vector<16x128xf32>
    %437 = arith.select %5, %433, %434 : vector<16x128xi1>, vector<16x128xf32>
    %438 = arith.addf %436, %437 : vector<16x128xf32>
    %c1_i32_164 = arith.constant 1 : i32
    %439 = tpu.dynamic_rotate %438 by %c1_i32_164 dim 1 : vector<16x128xf32>, i32 -> vector<16x128xf32>
    %c127_i32_165 = arith.constant 127 : i32
    %440 = tpu.dynamic_rotate %438 by %c127_i32_165 dim 1 : vector<16x128xf32>, i32 -> vector<16x128xf32>
    %441 = arith.select %23, %440, %439 : vector<16x128xi1>, vector<16x128xf32>
    %442 = arith.addf %438, %441 : vector<16x128xf32>
    %443 = arith.select %25, %439, %440 : vector<16x128xi1>, vector<16x128xf32>
    %444 = arith.addf %442, %443 : vector<16x128xf32>
    %cst_166 = arith.constant 0.111111112 : f32
    %445 = vector.broadcast %cst_166 : f32 to vector<16x128xf32>
    %446 = arith.mulf %444, %445 : vector<16x128xf32>
    %447 = arith.subf %446, %431 : vector<16x128xf32>
    %448 = arith.mulf %430, %165 : vector<16x128xf32>
    %449 = arith.mulf %416, %149 : vector<16x128xf32>
    %c1_i32_167 = arith.constant 1 : i32
    %450 = tpu.dynamic_rotate %449 by %c1_i32_167 dim 0 : vector<16x128xf32>, i32 -> vector<16x128xf32>
    %c15_i32_168 = arith.constant 15 : i32
    %451 = tpu.dynamic_rotate %449 by %c15_i32_168 dim 0 : vector<16x128xf32>, i32 -> vector<16x128xf32>
    %452 = arith.select %3, %451, %450 : vector<16x128xi1>, vector<16x128xf32>
    %453 = arith.addf %449, %452 : vector<16x128xf32>
    %454 = arith.select %5, %450, %451 : vector<16x128xi1>, vector<16x128xf32>
    %455 = arith.addf %453, %454 : vector<16x128xf32>
    %c1_i32_169 = arith.constant 1 : i32
    %456 = tpu.dynamic_rotate %455 by %c1_i32_169 dim 1 : vector<16x128xf32>, i32 -> vector<16x128xf32>
    %c127_i32_170 = arith.constant 127 : i32
    %457 = tpu.dynamic_rotate %455 by %c127_i32_170 dim 1 : vector<16x128xf32>, i32 -> vector<16x128xf32>
    %458 = arith.select %23, %457, %456 : vector<16x128xi1>, vector<16x128xf32>
    %459 = arith.addf %455, %458 : vector<16x128xf32>
    %460 = arith.select %25, %456, %457 : vector<16x128xi1>, vector<16x128xf32>
    %461 = arith.addf %459, %460 : vector<16x128xf32>
    %cst_171 = arith.constant 0.222222224 : f32
    %462 = vector.broadcast %cst_171 : f32 to vector<16x128xf32>
    %463 = arith.mulf %461, %462 : vector<16x128xf32>
    %464 = arith.subf %463, %448 : vector<16x128xf32>
    %cst_172 = arith.constant 8.99999984E-4 : f32
    %465 = vector.broadcast %cst_172 : f32 to vector<16x128xf32>
    %466 = arith.addf %464, %465 : vector<16x128xf32>
    %cst_173 = arith.constant 9.99999974E-5 : f32
    %467 = vector.broadcast %cst_173 : f32 to vector<16x128xf32>
    %468 = arith.addf %448, %467 : vector<16x128xf32>
    %469 = arith.mulf %468, %466 : vector<16x128xf32>
    %470 = arith.addf %431, %167 : vector<16x128xf32>
    %471 = arith.addf %447, %185 : vector<16x128xf32>
    %472 = arith.mulf %470, %471 : vector<16x128xf32>
    %473 = tpu.reciprocal %472 {approx = true} : vector<16x128xf32> -> vector<16x128xf32>
    %474 = arith.mulf %469, %473 : vector<16x128xf32>
    %cst_174 = arith.constant 1.000000e+00 : f32
    %475 = vector.broadcast %cst_174 : f32 to vector<16x128xf32>
    %476 = arith.subf %475, %474 : vector<16x128xf32>
    %cst_175 = arith.constant 5.000000e-01 : f32
    %477 = vector.broadcast %cst_175 : f32 to vector<16x128xf32>
    %478 = arith.mulf %476, %477 : vector<16x128xf32>
    %cst_176 = arith.constant 0.000000e+00 : f32
    %cst_177 = arith.constant 1.000000e+00 : f32
    %479 = vector.broadcast %cst_176 : f32 to vector<16x128xf32>
    %480 = arith.maximumf %479, %478 : vector<16x128xf32>
    %481 = vector.broadcast %cst_177 : f32 to vector<16x128xf32>
    %482 = arith.minimumf %481, %480 : vector<16x128xf32>
    %483 = arith.addf %414, %482 : vector<16x128xf32>
    %cst_178 = arith.constant 2.500000e-01 : f32
    %484 = vector.broadcast %cst_178 : f32 to vector<16x128xf32>
    %485 = arith.mulf %483, %484 : vector<16x128xf32>
    %cst_179 = arith.constant 0x7F800000 : f32
    %486 = vector.broadcast %cst_179 : f32 to vector<16x128xf32>
    %487 = arith.select %206, %486, %485 : vector<16x128xi1>, vector<16x128xf32>
    %488 = arith.minimumf %186, %487 : vector<16x128xf32>
    %489 = arith.andi %187, %206 : vector<16x128xi1>
    %c0_180 = arith.constant 0 : index
    %c0_181 = arith.constant 0 : index
    %c0_182 = arith.constant 0 : index
    %c0_183 = arith.constant 0 : index
    %490 = vector.load %arg3[%c0_180, %c0_181, %c0_182, %c0_183] : memref<1x4x16x128xf32, #tpu.memory_space<vmem>>, vector<1x1x16x128xf32>
    %491 = vector.shape_cast %490 : vector<1x1x16x128xf32> to vector<16x128xf32>
    %c0_184 = arith.constant 0 : index
    %c1_185 = arith.constant 1 : index
    %c0_186 = arith.constant 0 : index
    %c0_187 = arith.constant 0 : index
    %492 = vector.load %arg3[%c0_184, %c1_185, %c0_186, %c0_187] : memref<1x4x16x128xf32, #tpu.memory_space<vmem>>, vector<1x1x16x128xf32>
    %493 = vector.shape_cast %492 : vector<1x1x16x128xf32> to vector<16x128xf32>
    %c0_188 = arith.constant 0 : index
    %c2_189 = arith.constant 2 : index
    %c0_190 = arith.constant 0 : index
    %c0_191 = arith.constant 0 : index
    %494 = vector.load %arg3[%c0_188, %c2_189, %c0_190, %c0_191] : memref<1x4x16x128xf32, #tpu.memory_space<vmem>>, vector<1x1x16x128xf32>
    %495 = vector.shape_cast %494 : vector<1x1x16x128xf32> to vector<16x128xf32>
    %c0_192 = arith.constant 0 : index
    %c3_193 = arith.constant 3 : index
    %c0_194 = arith.constant 0 : index
    %c0_195 = arith.constant 0 : index
    %496 = vector.load %arg3[%c0_192, %c3_193, %c0_194, %c0_195] : memref<1x4x16x128xf32, #tpu.memory_space<vmem>>, vector<1x1x16x128xf32>
    %497 = vector.shape_cast %496 : vector<1x1x16x128xf32> to vector<16x128xf32>
    %cst_196 = arith.constant 0.000000e+00 : f32
    %498 = vector.broadcast %cst_196 : f32 to vector<16x128xf32>
    %499 = arith.cmpf oeq, %491, %498 : vector<16x128xf32>
    %cst_197 = arith.constant 0.000000e+00 : f32
    %500 = vector.broadcast %cst_197 : f32 to vector<16x128xf32>
    %501 = arith.cmpf oeq, %493, %500 : vector<16x128xf32>
    %502 = arith.ori %499, %501 : vector<16x128xi1>
    %cst_198 = arith.constant 0.000000e+00 : f32
    %503 = vector.broadcast %cst_198 : f32 to vector<16x128xf32>
    %504 = arith.cmpf oeq, %495, %503 : vector<16x128xf32>
    %505 = arith.ori %502, %504 : vector<16x128xi1>
    %cst_199 = arith.constant 0.000000e+00 : f32
    %506 = vector.broadcast %cst_199 : f32 to vector<16x128xf32>
    %507 = arith.cmpf oeq, %497, %506 : vector<16x128xf32>
    %508 = arith.ori %505, %507 : vector<16x128xi1>
    %cst_200 = arith.constant 0.000000e+00 : f32
    %509 = vector.broadcast %cst_200 : f32 to vector<16x128xf32>
    %cst_201 = arith.constant 5.000000e-01 : f32
    %510 = vector.broadcast %cst_201 : f32 to vector<16x128xf32>
    %511 = arith.subf %491, %510 : vector<16x128xf32>
    %c1_i32_202 = arith.constant 1 : i32
    %512 = tpu.dynamic_rotate %511 by %c1_i32_202 dim 0 : vector<16x128xf32>, i32 -> vector<16x128xf32>
    %c15_i32_203 = arith.constant 15 : i32
    %513 = tpu.dynamic_rotate %511 by %c15_i32_203 dim 0 : vector<16x128xf32>, i32 -> vector<16x128xf32>
    %514 = arith.select %3, %513, %512 : vector<16x128xi1>, vector<16x128xf32>
    %515 = arith.addf %511, %514 : vector<16x128xf32>
    %516 = arith.select %5, %512, %513 : vector<16x128xi1>, vector<16x128xf32>
    %517 = arith.addf %515, %516 : vector<16x128xf32>
    %c1_i32_204 = arith.constant 1 : i32
    %518 = tpu.dynamic_rotate %517 by %c1_i32_204 dim 1 : vector<16x128xf32>, i32 -> vector<16x128xf32>
    %c127_i32_205 = arith.constant 127 : i32
    %519 = tpu.dynamic_rotate %517 by %c127_i32_205 dim 1 : vector<16x128xf32>, i32 -> vector<16x128xf32>
    %520 = arith.select %23, %519, %518 : vector<16x128xi1>, vector<16x128xf32>
    %521 = arith.addf %517, %520 : vector<16x128xf32>
    %522 = arith.select %25, %518, %519 : vector<16x128xi1>, vector<16x128xf32>
    %523 = arith.addf %521, %522 : vector<16x128xf32>
    %cst_206 = arith.constant 0.111111112 : f32
    %524 = vector.broadcast %cst_206 : f32 to vector<16x128xf32>
    %525 = arith.mulf %523, %524 : vector<16x128xf32>
    %526 = arith.mulf %525, %525 : vector<16x128xf32>
    %527 = arith.mulf %511, %511 : vector<16x128xf32>
    %c1_i32_207 = arith.constant 1 : i32
    %528 = tpu.dynamic_rotate %527 by %c1_i32_207 dim 0 : vector<16x128xf32>, i32 -> vector<16x128xf32>
    %c15_i32_208 = arith.constant 15 : i32
    %529 = tpu.dynamic_rotate %527 by %c15_i32_208 dim 0 : vector<16x128xf32>, i32 -> vector<16x128xf32>
    %530 = arith.select %3, %529, %528 : vector<16x128xi1>, vector<16x128xf32>
    %531 = arith.addf %527, %530 : vector<16x128xf32>
    %532 = arith.select %5, %528, %529 : vector<16x128xi1>, vector<16x128xf32>
    %533 = arith.addf %531, %532 : vector<16x128xf32>
    %c1_i32_209 = arith.constant 1 : i32
    %534 = tpu.dynamic_rotate %533 by %c1_i32_209 dim 1 : vector<16x128xf32>, i32 -> vector<16x128xf32>
    %c127_i32_210 = arith.constant 127 : i32
    %535 = tpu.dynamic_rotate %533 by %c127_i32_210 dim 1 : vector<16x128xf32>, i32 -> vector<16x128xf32>
    %536 = arith.select %23, %535, %534 : vector<16x128xi1>, vector<16x128xf32>
    %537 = arith.addf %533, %536 : vector<16x128xf32>
    %538 = arith.select %25, %534, %535 : vector<16x128xi1>, vector<16x128xf32>
    %539 = arith.addf %537, %538 : vector<16x128xf32>
    %cst_211 = arith.constant 0.111111112 : f32
    %540 = vector.broadcast %cst_211 : f32 to vector<16x128xf32>
    %541 = arith.mulf %539, %540 : vector<16x128xf32>
    %542 = arith.subf %541, %526 : vector<16x128xf32>
    %543 = arith.mulf %525, %45 : vector<16x128xf32>
    %544 = arith.mulf %511, %29 : vector<16x128xf32>
    %c1_i32_212 = arith.constant 1 : i32
    %545 = tpu.dynamic_rotate %544 by %c1_i32_212 dim 0 : vector<16x128xf32>, i32 -> vector<16x128xf32>
    %c15_i32_213 = arith.constant 15 : i32
    %546 = tpu.dynamic_rotate %544 by %c15_i32_213 dim 0 : vector<16x128xf32>, i32 -> vector<16x128xf32>
    %547 = arith.select %3, %546, %545 : vector<16x128xi1>, vector<16x128xf32>
    %548 = arith.addf %544, %547 : vector<16x128xf32>
    %549 = arith.select %5, %545, %546 : vector<16x128xi1>, vector<16x128xf32>
    %550 = arith.addf %548, %549 : vector<16x128xf32>
    %c1_i32_214 = arith.constant 1 : i32
    %551 = tpu.dynamic_rotate %550 by %c1_i32_214 dim 1 : vector<16x128xf32>, i32 -> vector<16x128xf32>
    %c127_i32_215 = arith.constant 127 : i32
    %552 = tpu.dynamic_rotate %550 by %c127_i32_215 dim 1 : vector<16x128xf32>, i32 -> vector<16x128xf32>
    %553 = arith.select %23, %552, %551 : vector<16x128xi1>, vector<16x128xf32>
    %554 = arith.addf %550, %553 : vector<16x128xf32>
    %555 = arith.select %25, %551, %552 : vector<16x128xi1>, vector<16x128xf32>
    %556 = arith.addf %554, %555 : vector<16x128xf32>
    %cst_216 = arith.constant 0.222222224 : f32
    %557 = vector.broadcast %cst_216 : f32 to vector<16x128xf32>
    %558 = arith.mulf %556, %557 : vector<16x128xf32>
    %559 = arith.subf %558, %543 : vector<16x128xf32>
    %cst_217 = arith.constant 8.99999984E-4 : f32
    %560 = vector.broadcast %cst_217 : f32 to vector<16x128xf32>
    %561 = arith.addf %559, %560 : vector<16x128xf32>
    %cst_218 = arith.constant 9.99999974E-5 : f32
    %562 = vector.broadcast %cst_218 : f32 to vector<16x128xf32>
    %563 = arith.addf %543, %562 : vector<16x128xf32>
    %564 = arith.mulf %563, %561 : vector<16x128xf32>
    %565 = arith.addf %526, %47 : vector<16x128xf32>
    %566 = arith.addf %542, %65 : vector<16x128xf32>
    %567 = arith.mulf %565, %566 : vector<16x128xf32>
    %568 = tpu.reciprocal %567 {approx = true} : vector<16x128xf32> -> vector<16x128xf32>
    %569 = arith.mulf %564, %568 : vector<16x128xf32>
    %cst_219 = arith.constant 1.000000e+00 : f32
    %570 = vector.broadcast %cst_219 : f32 to vector<16x128xf32>
    %571 = arith.subf %570, %569 : vector<16x128xf32>
    %cst_220 = arith.constant 5.000000e-01 : f32
    %572 = vector.broadcast %cst_220 : f32 to vector<16x128xf32>
    %573 = arith.mulf %571, %572 : vector<16x128xf32>
    %cst_221 = arith.constant 0.000000e+00 : f32
    %cst_222 = arith.constant 1.000000e+00 : f32
    %574 = vector.broadcast %cst_221 : f32 to vector<16x128xf32>
    %575 = arith.maximumf %574, %573 : vector<16x128xf32>
    %576 = vector.broadcast %cst_222 : f32 to vector<16x128xf32>
    %577 = arith.minimumf %576, %575 : vector<16x128xf32>
    %578 = arith.addf %509, %577 : vector<16x128xf32>
    %cst_223 = arith.constant 5.000000e-01 : f32
    %579 = vector.broadcast %cst_223 : f32 to vector<16x128xf32>
    %580 = arith.subf %493, %579 : vector<16x128xf32>
    %c1_i32_224 = arith.constant 1 : i32
    %581 = tpu.dynamic_rotate %580 by %c1_i32_224 dim 0 : vector<16x128xf32>, i32 -> vector<16x128xf32>
    %c15_i32_225 = arith.constant 15 : i32
    %582 = tpu.dynamic_rotate %580 by %c15_i32_225 dim 0 : vector<16x128xf32>, i32 -> vector<16x128xf32>
    %583 = arith.select %3, %582, %581 : vector<16x128xi1>, vector<16x128xf32>
    %584 = arith.addf %580, %583 : vector<16x128xf32>
    %585 = arith.select %5, %581, %582 : vector<16x128xi1>, vector<16x128xf32>
    %586 = arith.addf %584, %585 : vector<16x128xf32>
    %c1_i32_226 = arith.constant 1 : i32
    %587 = tpu.dynamic_rotate %586 by %c1_i32_226 dim 1 : vector<16x128xf32>, i32 -> vector<16x128xf32>
    %c127_i32_227 = arith.constant 127 : i32
    %588 = tpu.dynamic_rotate %586 by %c127_i32_227 dim 1 : vector<16x128xf32>, i32 -> vector<16x128xf32>
    %589 = arith.select %23, %588, %587 : vector<16x128xi1>, vector<16x128xf32>
    %590 = arith.addf %586, %589 : vector<16x128xf32>
    %591 = arith.select %25, %587, %588 : vector<16x128xi1>, vector<16x128xf32>
    %592 = arith.addf %590, %591 : vector<16x128xf32>
    %cst_228 = arith.constant 0.111111112 : f32
    %593 = vector.broadcast %cst_228 : f32 to vector<16x128xf32>
    %594 = arith.mulf %592, %593 : vector<16x128xf32>
    %595 = arith.mulf %594, %594 : vector<16x128xf32>
    %596 = arith.mulf %580, %580 : vector<16x128xf32>
    %c1_i32_229 = arith.constant 1 : i32
    %597 = tpu.dynamic_rotate %596 by %c1_i32_229 dim 0 : vector<16x128xf32>, i32 -> vector<16x128xf32>
    %c15_i32_230 = arith.constant 15 : i32
    %598 = tpu.dynamic_rotate %596 by %c15_i32_230 dim 0 : vector<16x128xf32>, i32 -> vector<16x128xf32>
    %599 = arith.select %3, %598, %597 : vector<16x128xi1>, vector<16x128xf32>
    %600 = arith.addf %596, %599 : vector<16x128xf32>
    %601 = arith.select %5, %597, %598 : vector<16x128xi1>, vector<16x128xf32>
    %602 = arith.addf %600, %601 : vector<16x128xf32>
    %c1_i32_231 = arith.constant 1 : i32
    %603 = tpu.dynamic_rotate %602 by %c1_i32_231 dim 1 : vector<16x128xf32>, i32 -> vector<16x128xf32>
    %c127_i32_232 = arith.constant 127 : i32
    %604 = tpu.dynamic_rotate %602 by %c127_i32_232 dim 1 : vector<16x128xf32>, i32 -> vector<16x128xf32>
    %605 = arith.select %23, %604, %603 : vector<16x128xi1>, vector<16x128xf32>
    %606 = arith.addf %602, %605 : vector<16x128xf32>
    %607 = arith.select %25, %603, %604 : vector<16x128xi1>, vector<16x128xf32>
    %608 = arith.addf %606, %607 : vector<16x128xf32>
    %cst_233 = arith.constant 0.111111112 : f32
    %609 = vector.broadcast %cst_233 : f32 to vector<16x128xf32>
    %610 = arith.mulf %608, %609 : vector<16x128xf32>
    %611 = arith.subf %610, %595 : vector<16x128xf32>
    %612 = arith.mulf %594, %85 : vector<16x128xf32>
    %613 = arith.mulf %580, %69 : vector<16x128xf32>
    %c1_i32_234 = arith.constant 1 : i32
    %614 = tpu.dynamic_rotate %613 by %c1_i32_234 dim 0 : vector<16x128xf32>, i32 -> vector<16x128xf32>
    %c15_i32_235 = arith.constant 15 : i32
    %615 = tpu.dynamic_rotate %613 by %c15_i32_235 dim 0 : vector<16x128xf32>, i32 -> vector<16x128xf32>
    %616 = arith.select %3, %615, %614 : vector<16x128xi1>, vector<16x128xf32>
    %617 = arith.addf %613, %616 : vector<16x128xf32>
    %618 = arith.select %5, %614, %615 : vector<16x128xi1>, vector<16x128xf32>
    %619 = arith.addf %617, %618 : vector<16x128xf32>
    %c1_i32_236 = arith.constant 1 : i32
    %620 = tpu.dynamic_rotate %619 by %c1_i32_236 dim 1 : vector<16x128xf32>, i32 -> vector<16x128xf32>
    %c127_i32_237 = arith.constant 127 : i32
    %621 = tpu.dynamic_rotate %619 by %c127_i32_237 dim 1 : vector<16x128xf32>, i32 -> vector<16x128xf32>
    %622 = arith.select %23, %621, %620 : vector<16x128xi1>, vector<16x128xf32>
    %623 = arith.addf %619, %622 : vector<16x128xf32>
    %624 = arith.select %25, %620, %621 : vector<16x128xi1>, vector<16x128xf32>
    %625 = arith.addf %623, %624 : vector<16x128xf32>
    %cst_238 = arith.constant 0.222222224 : f32
    %626 = vector.broadcast %cst_238 : f32 to vector<16x128xf32>
    %627 = arith.mulf %625, %626 : vector<16x128xf32>
    %628 = arith.subf %627, %612 : vector<16x128xf32>
    %cst_239 = arith.constant 8.99999984E-4 : f32
    %629 = vector.broadcast %cst_239 : f32 to vector<16x128xf32>
    %630 = arith.addf %628, %629 : vector<16x128xf32>
    %cst_240 = arith.constant 9.99999974E-5 : f32
    %631 = vector.broadcast %cst_240 : f32 to vector<16x128xf32>
    %632 = arith.addf %612, %631 : vector<16x128xf32>
    %633 = arith.mulf %632, %630 : vector<16x128xf32>
    %634 = arith.addf %595, %87 : vector<16x128xf32>
    %635 = arith.addf %611, %105 : vector<16x128xf32>
    %636 = arith.mulf %634, %635 : vector<16x128xf32>
    %637 = tpu.reciprocal %636 {approx = true} : vector<16x128xf32> -> vector<16x128xf32>
    %638 = arith.mulf %633, %637 : vector<16x128xf32>
    %cst_241 = arith.constant 1.000000e+00 : f32
    %639 = vector.broadcast %cst_241 : f32 to vector<16x128xf32>
    %640 = arith.subf %639, %638 : vector<16x128xf32>
    %cst_242 = arith.constant 5.000000e-01 : f32
    %641 = vector.broadcast %cst_242 : f32 to vector<16x128xf32>
    %642 = arith.mulf %640, %641 : vector<16x128xf32>
    %cst_243 = arith.constant 0.000000e+00 : f32
    %cst_244 = arith.constant 1.000000e+00 : f32
    %643 = vector.broadcast %cst_243 : f32 to vector<16x128xf32>
    %644 = arith.maximumf %643, %642 : vector<16x128xf32>
    %645 = vector.broadcast %cst_244 : f32 to vector<16x128xf32>
    %646 = arith.minimumf %645, %644 : vector<16x128xf32>
    %647 = arith.addf %578, %646 : vector<16x128xf32>
    %cst_245 = arith.constant 5.000000e-01 : f32
    %648 = vector.broadcast %cst_245 : f32 to vector<16x128xf32>
    %649 = arith.subf %495, %648 : vector<16x128xf32>
    %c1_i32_246 = arith.constant 1 : i32
    %650 = tpu.dynamic_rotate %649 by %c1_i32_246 dim 0 : vector<16x128xf32>, i32 -> vector<16x128xf32>
    %c15_i32_247 = arith.constant 15 : i32
    %651 = tpu.dynamic_rotate %649 by %c15_i32_247 dim 0 : vector<16x128xf32>, i32 -> vector<16x128xf32>
    %652 = arith.select %3, %651, %650 : vector<16x128xi1>, vector<16x128xf32>
    %653 = arith.addf %649, %652 : vector<16x128xf32>
    %654 = arith.select %5, %650, %651 : vector<16x128xi1>, vector<16x128xf32>
    %655 = arith.addf %653, %654 : vector<16x128xf32>
    %c1_i32_248 = arith.constant 1 : i32
    %656 = tpu.dynamic_rotate %655 by %c1_i32_248 dim 1 : vector<16x128xf32>, i32 -> vector<16x128xf32>
    %c127_i32_249 = arith.constant 127 : i32
    %657 = tpu.dynamic_rotate %655 by %c127_i32_249 dim 1 : vector<16x128xf32>, i32 -> vector<16x128xf32>
    %658 = arith.select %23, %657, %656 : vector<16x128xi1>, vector<16x128xf32>
    %659 = arith.addf %655, %658 : vector<16x128xf32>
    %660 = arith.select %25, %656, %657 : vector<16x128xi1>, vector<16x128xf32>
    %661 = arith.addf %659, %660 : vector<16x128xf32>
    %cst_250 = arith.constant 0.111111112 : f32
    %662 = vector.broadcast %cst_250 : f32 to vector<16x128xf32>
    %663 = arith.mulf %661, %662 : vector<16x128xf32>
    %664 = arith.mulf %663, %663 : vector<16x128xf32>
    %665 = arith.mulf %649, %649 : vector<16x128xf32>
    %c1_i32_251 = arith.constant 1 : i32
    %666 = tpu.dynamic_rotate %665 by %c1_i32_251 dim 0 : vector<16x128xf32>, i32 -> vector<16x128xf32>
    %c15_i32_252 = arith.constant 15 : i32
    %667 = tpu.dynamic_rotate %665 by %c15_i32_252 dim 0 : vector<16x128xf32>, i32 -> vector<16x128xf32>
    %668 = arith.select %3, %667, %666 : vector<16x128xi1>, vector<16x128xf32>
    %669 = arith.addf %665, %668 : vector<16x128xf32>
    %670 = arith.select %5, %666, %667 : vector<16x128xi1>, vector<16x128xf32>
    %671 = arith.addf %669, %670 : vector<16x128xf32>
    %c1_i32_253 = arith.constant 1 : i32
    %672 = tpu.dynamic_rotate %671 by %c1_i32_253 dim 1 : vector<16x128xf32>, i32 -> vector<16x128xf32>
    %c127_i32_254 = arith.constant 127 : i32
    %673 = tpu.dynamic_rotate %671 by %c127_i32_254 dim 1 : vector<16x128xf32>, i32 -> vector<16x128xf32>
    %674 = arith.select %23, %673, %672 : vector<16x128xi1>, vector<16x128xf32>
    %675 = arith.addf %671, %674 : vector<16x128xf32>
    %676 = arith.select %25, %672, %673 : vector<16x128xi1>, vector<16x128xf32>
    %677 = arith.addf %675, %676 : vector<16x128xf32>
    %cst_255 = arith.constant 0.111111112 : f32
    %678 = vector.broadcast %cst_255 : f32 to vector<16x128xf32>
    %679 = arith.mulf %677, %678 : vector<16x128xf32>
    %680 = arith.subf %679, %664 : vector<16x128xf32>
    %681 = arith.mulf %663, %125 : vector<16x128xf32>
    %682 = arith.mulf %649, %109 : vector<16x128xf32>
    %c1_i32_256 = arith.constant 1 : i32
    %683 = tpu.dynamic_rotate %682 by %c1_i32_256 dim 0 : vector<16x128xf32>, i32 -> vector<16x128xf32>
    %c15_i32_257 = arith.constant 15 : i32
    %684 = tpu.dynamic_rotate %682 by %c15_i32_257 dim 0 : vector<16x128xf32>, i32 -> vector<16x128xf32>
    %685 = arith.select %3, %684, %683 : vector<16x128xi1>, vector<16x128xf32>
    %686 = arith.addf %682, %685 : vector<16x128xf32>
    %687 = arith.select %5, %683, %684 : vector<16x128xi1>, vector<16x128xf32>
    %688 = arith.addf %686, %687 : vector<16x128xf32>
    %c1_i32_258 = arith.constant 1 : i32
    %689 = tpu.dynamic_rotate %688 by %c1_i32_258 dim 1 : vector<16x128xf32>, i32 -> vector<16x128xf32>
    %c127_i32_259 = arith.constant 127 : i32
    %690 = tpu.dynamic_rotate %688 by %c127_i32_259 dim 1 : vector<16x128xf32>, i32 -> vector<16x128xf32>
    %691 = arith.select %23, %690, %689 : vector<16x128xi1>, vector<16x128xf32>
    %692 = arith.addf %688, %691 : vector<16x128xf32>
    %693 = arith.select %25, %689, %690 : vector<16x128xi1>, vector<16x128xf32>
    %694 = arith.addf %692, %693 : vector<16x128xf32>
    %cst_260 = arith.constant 0.222222224 : f32
    %695 = vector.broadcast %cst_260 : f32 to vector<16x128xf32>
    %696 = arith.mulf %694, %695 : vector<16x128xf32>
    %697 = arith.subf %696, %681 : vector<16x128xf32>
    %cst_261 = arith.constant 8.99999984E-4 : f32
    %698 = vector.broadcast %cst_261 : f32 to vector<16x128xf32>
    %699 = arith.addf %697, %698 : vector<16x128xf32>
    %cst_262 = arith.constant 9.99999974E-5 : f32
    %700 = vector.broadcast %cst_262 : f32 to vector<16x128xf32>
    %701 = arith.addf %681, %700 : vector<16x128xf32>
    %702 = arith.mulf %701, %699 : vector<16x128xf32>
    %703 = arith.addf %664, %127 : vector<16x128xf32>
    %704 = arith.addf %680, %145 : vector<16x128xf32>
    %705 = arith.mulf %703, %704 : vector<16x128xf32>
    %706 = tpu.reciprocal %705 {approx = true} : vector<16x128xf32> -> vector<16x128xf32>
    %707 = arith.mulf %702, %706 : vector<16x128xf32>
    %cst_263 = arith.constant 1.000000e+00 : f32
    %708 = vector.broadcast %cst_263 : f32 to vector<16x128xf32>
    %709 = arith.subf %708, %707 : vector<16x128xf32>
    %cst_264 = arith.constant 5.000000e-01 : f32
    %710 = vector.broadcast %cst_264 : f32 to vector<16x128xf32>
    %711 = arith.mulf %709, %710 : vector<16x128xf32>
    %cst_265 = arith.constant 0.000000e+00 : f32
    %cst_266 = arith.constant 1.000000e+00 : f32
    %712 = vector.broadcast %cst_265 : f32 to vector<16x128xf32>
    %713 = arith.maximumf %712, %711 : vector<16x128xf32>
    %714 = vector.broadcast %cst_266 : f32 to vector<16x128xf32>
    %715 = arith.minimumf %714, %713 : vector<16x128xf32>
    %716 = arith.addf %647, %715 : vector<16x128xf32>
    %cst_267 = arith.constant 5.000000e-01 : f32
    %717 = vector.broadcast %cst_267 : f32 to vector<16x128xf32>
    %718 = arith.subf %497, %717 : vector<16x128xf32>
    %c1_i32_268 = arith.constant 1 : i32
    %719 = tpu.dynamic_rotate %718 by %c1_i32_268 dim 0 : vector<16x128xf32>, i32 -> vector<16x128xf32>
    %c15_i32_269 = arith.constant 15 : i32
    %720 = tpu.dynamic_rotate %718 by %c15_i32_269 dim 0 : vector<16x128xf32>, i32 -> vector<16x128xf32>
    %721 = arith.select %3, %720, %719 : vector<16x128xi1>, vector<16x128xf32>
    %722 = arith.addf %718, %721 : vector<16x128xf32>
    %723 = arith.select %5, %719, %720 : vector<16x128xi1>, vector<16x128xf32>
    %724 = arith.addf %722, %723 : vector<16x128xf32>
    %c1_i32_270 = arith.constant 1 : i32
    %725 = tpu.dynamic_rotate %724 by %c1_i32_270 dim 1 : vector<16x128xf32>, i32 -> vector<16x128xf32>
    %c127_i32_271 = arith.constant 127 : i32
    %726 = tpu.dynamic_rotate %724 by %c127_i32_271 dim 1 : vector<16x128xf32>, i32 -> vector<16x128xf32>
    %727 = arith.select %23, %726, %725 : vector<16x128xi1>, vector<16x128xf32>
    %728 = arith.addf %724, %727 : vector<16x128xf32>
    %729 = arith.select %25, %725, %726 : vector<16x128xi1>, vector<16x128xf32>
    %730 = arith.addf %728, %729 : vector<16x128xf32>
    %cst_272 = arith.constant 0.111111112 : f32
    %731 = vector.broadcast %cst_272 : f32 to vector<16x128xf32>
    %732 = arith.mulf %730, %731 : vector<16x128xf32>
    %733 = arith.mulf %732, %732 : vector<16x128xf32>
    %734 = arith.mulf %718, %718 : vector<16x128xf32>
    %c1_i32_273 = arith.constant 1 : i32
    %735 = tpu.dynamic_rotate %734 by %c1_i32_273 dim 0 : vector<16x128xf32>, i32 -> vector<16x128xf32>
    %c15_i32_274 = arith.constant 15 : i32
    %736 = tpu.dynamic_rotate %734 by %c15_i32_274 dim 0 : vector<16x128xf32>, i32 -> vector<16x128xf32>
    %737 = arith.select %3, %736, %735 : vector<16x128xi1>, vector<16x128xf32>
    %738 = arith.addf %734, %737 : vector<16x128xf32>
    %739 = arith.select %5, %735, %736 : vector<16x128xi1>, vector<16x128xf32>
    %740 = arith.addf %738, %739 : vector<16x128xf32>
    %c1_i32_275 = arith.constant 1 : i32
    %741 = tpu.dynamic_rotate %740 by %c1_i32_275 dim 1 : vector<16x128xf32>, i32 -> vector<16x128xf32>
    %c127_i32_276 = arith.constant 127 : i32
    %742 = tpu.dynamic_rotate %740 by %c127_i32_276 dim 1 : vector<16x128xf32>, i32 -> vector<16x128xf32>
    %743 = arith.select %23, %742, %741 : vector<16x128xi1>, vector<16x128xf32>
    %744 = arith.addf %740, %743 : vector<16x128xf32>
    %745 = arith.select %25, %741, %742 : vector<16x128xi1>, vector<16x128xf32>
    %746 = arith.addf %744, %745 : vector<16x128xf32>
    %cst_277 = arith.constant 0.111111112 : f32
    %747 = vector.broadcast %cst_277 : f32 to vector<16x128xf32>
    %748 = arith.mulf %746, %747 : vector<16x128xf32>
    %749 = arith.subf %748, %733 : vector<16x128xf32>
    %750 = arith.mulf %732, %165 : vector<16x128xf32>
    %751 = arith.mulf %718, %149 : vector<16x128xf32>
    %c1_i32_278 = arith.constant 1 : i32
    %752 = tpu.dynamic_rotate %751 by %c1_i32_278 dim 0 : vector<16x128xf32>, i32 -> vector<16x128xf32>
    %c15_i32_279 = arith.constant 15 : i32
    %753 = tpu.dynamic_rotate %751 by %c15_i32_279 dim 0 : vector<16x128xf32>, i32 -> vector<16x128xf32>
    %754 = arith.select %3, %753, %752 : vector<16x128xi1>, vector<16x128xf32>
    %755 = arith.addf %751, %754 : vector<16x128xf32>
    %756 = arith.select %5, %752, %753 : vector<16x128xi1>, vector<16x128xf32>
    %757 = arith.addf %755, %756 : vector<16x128xf32>
    %c1_i32_280 = arith.constant 1 : i32
    %758 = tpu.dynamic_rotate %757 by %c1_i32_280 dim 1 : vector<16x128xf32>, i32 -> vector<16x128xf32>
    %c127_i32_281 = arith.constant 127 : i32
    %759 = tpu.dynamic_rotate %757 by %c127_i32_281 dim 1 : vector<16x128xf32>, i32 -> vector<16x128xf32>
    %760 = arith.select %23, %759, %758 : vector<16x128xi1>, vector<16x128xf32>
    %761 = arith.addf %757, %760 : vector<16x128xf32>
    %762 = arith.select %25, %758, %759 : vector<16x128xi1>, vector<16x128xf32>
    %763 = arith.addf %761, %762 : vector<16x128xf32>
    %cst_282 = arith.constant 0.222222224 : f32
    %764 = vector.broadcast %cst_282 : f32 to vector<16x128xf32>
    %765 = arith.mulf %763, %764 : vector<16x128xf32>
    %766 = arith.subf %765, %750 : vector<16x128xf32>
    %cst_283 = arith.constant 8.99999984E-4 : f32
    %767 = vector.broadcast %cst_283 : f32 to vector<16x128xf32>
    %768 = arith.addf %766, %767 : vector<16x128xf32>
    %cst_284 = arith.constant 9.99999974E-5 : f32
    %769 = vector.broadcast %cst_284 : f32 to vector<16x128xf32>
    %770 = arith.addf %750, %769 : vector<16x128xf32>
    %771 = arith.mulf %770, %768 : vector<16x128xf32>
    %772 = arith.addf %733, %167 : vector<16x128xf32>
    %773 = arith.addf %749, %185 : vector<16x128xf32>
    %774 = arith.mulf %772, %773 : vector<16x128xf32>
    %775 = tpu.reciprocal %774 {approx = true} : vector<16x128xf32> -> vector<16x128xf32>
    %776 = arith.mulf %771, %775 : vector<16x128xf32>
    %cst_285 = arith.constant 1.000000e+00 : f32
    %777 = vector.broadcast %cst_285 : f32 to vector<16x128xf32>
    %778 = arith.subf %777, %776 : vector<16x128xf32>
    %cst_286 = arith.constant 5.000000e-01 : f32
    %779 = vector.broadcast %cst_286 : f32 to vector<16x128xf32>
    %780 = arith.mulf %778, %779 : vector<16x128xf32>
    %cst_287 = arith.constant 0.000000e+00 : f32
    %cst_288 = arith.constant 1.000000e+00 : f32
    %781 = vector.broadcast %cst_287 : f32 to vector<16x128xf32>
    %782 = arith.maximumf %781, %780 : vector<16x128xf32>
    %783 = vector.broadcast %cst_288 : f32 to vector<16x128xf32>
    %784 = arith.minimumf %783, %782 : vector<16x128xf32>
    %785 = arith.addf %716, %784 : vector<16x128xf32>
    %cst_289 = arith.constant 2.500000e-01 : f32
    %786 = vector.broadcast %cst_289 : f32 to vector<16x128xf32>
    %787 = arith.mulf %785, %786 : vector<16x128xf32>
    %cst_290 = arith.constant 0x7F800000 : f32
    %788 = vector.broadcast %cst_290 : f32 to vector<16x128xf32>
    %789 = arith.select %508, %788, %787 : vector<16x128xi1>, vector<16x128xf32>
    %790 = arith.minimumf %488, %789 : vector<16x128xf32>
    %791 = arith.andi %489, %508 : vector<16x128xi1>
    %cst_291 = arith.constant 0.000000e+00 : f32
    %792 = vector.broadcast %cst_291 : f32 to vector<16x128xf32>
    %793 = arith.select %791, %792, %790 : vector<16x128xi1>, vector<16x128xf32>
    %c0_292 = arith.constant 0 : index
    %c0_293 = arith.constant 0 : index
    %c0_294 = arith.constant 0 : index
    %794 = vector.load %arg4[%c0_292, %c0_293, %c0_294] : memref<1x16x128xf32, #tpu.memory_space<vmem>>, vector<1x16x128xf32>
    %795 = vector.shape_cast %794 : vector<1x16x128xf32> to vector<16x128xf32>
    %796 = vector.shape_cast %793 : vector<16x128xf32> to vector<1x16x128xf32>
    tpu.vector_store %arg4[%c0_292, %c0_293, %c0_294], %796 {strides = array<i32>} : memref<1x16x128xf32, #tpu.memory_space<vmem>>, vector<1x16x128xf32>,
    return
  }
  func.func @transform_0(%arg0: i32) -> (i32, i32, i32, i32) {
    %c0_i32 = arith.constant 0 : i32
    %c0_i32_0 = arith.constant 0 : i32
    %c0_i32_1 = arith.constant 0 : i32
    %c0_i32_2 = arith.constant 0 : i32
    return %arg0, %c0_i32, %c0_i32_0, %c0_i32_1 : i32, i32, i32, i32
  }
  func.func @transform_1(%arg0: i32) -> (i32, i32, i32, i32) {
    %c0_i32 = arith.constant 0 : i32
    %c0_i32_0 = arith.constant 0 : i32
    %c0_i32_1 = arith.constant 0 : i32
    %c0_i32_2 = arith.constant 0 : i32
    return %arg0, %c0_i32, %c0_i32_0, %c0_i32_1 : i32, i32, i32, i32
  }
  func.func @transform_2(%arg0: i32) -> (i32, i32, i32, i32) {
    %c0_i32 = arith.constant 0 : i32
    %c0_i32_0 = arith.constant 0 : i32
    %c0_i32_1 = arith.constant 0 : i32
    %c0_i32_2 = arith.constant 0 : i32
    return %arg0, %c0_i32, %c0_i32_0, %c0_i32_1 : i32, i32, i32, i32
  }
  func.func @transform_3(%arg0: i32) -> (i32, i32, i32) {
    %c0_i32 = arith.constant 0 : i32
    %c0_i32_0 = arith.constant 0 : i32
    %c0_i32_1 = arith.constant 0 : i32
    return %arg0, %c0_i32, %c0_i32_0 : i32, i32, i32
  }
}

</mosaic_0001>

<llo_original>
// kernel: tpu_custom_call.1
$region0: #{tpu_custom_call.1}
  #allocation0 [shape = 'u32[]', space=smem, size = 0x4, offset = 0x4, fixed_abs, tag = 'smem constant byte address 0x4 - core index']
  #allocation1 [shape = 'u32[72,128]{1,0:T(1,128)}', space=vmem, size = 0x9000, scoped, tag = 'internal scratch']
  %s0 = inlined_call_operand.hbm [shape: f32[1,4,16,128], index: 0, kind: input, shape index: {}]
  %s1 = inlined_call_operand.hbm [shape: f32[1,4,16,128], index: 1, kind: input, shape index: {}]
  %s2 = inlined_call_operand.hbm [shape: f32[1,4,16,128], index: 2, kind: input, shape index: {}]
  %s3 = inlined_call_operand.hbm [shape: f32[1,16,128], index: 3, kind: output, shape index: {}]
  %s4 = sld [smem:[#allocation0]]
  $region34: #{tpu_custom_call.1} parent=0
    _
  %s6 = ssub.s32 1, %s4
  %s7 = scalar_select 0, %s6, %s4
  $region1: #{tpu_custom_call.1} parent=0
    #allocation2 [shape = 'u8[32768]{0}', space=vmem, size = 0x8000, scoped, tag = 'input window, operand 0, single buffered']
    #allocation3 [shape = 's32[1]{0}', space=sflag, size = 0x4, scoped, tag = 'scoped memory for tpu_custom_call.1']
    #allocation4 [shape = 's32[1]{0}', space=sflag, size = 0x4, scoped, tag = 'scoped memory for tpu_custom_call.1']
    #allocation5 [shape = 'u8[32768]{0}', space=vmem, size = 0x8000, scoped, tag = 'input window, operand 1, single buffered']
    #allocation6 [shape = 's32[1]{0}', space=sflag, size = 0x4, scoped, tag = 'scoped memory for tpu_custom_call.1']
    #allocation7 [shape = 'u8[32768]{0}', space=vmem, size = 0x8000, scoped, tag = 'input window, operand 2, single buffered']
    #allocation8 [shape = 'u8[8192]{0}', space=vmem, size = 0x2000, scoped, tag = 'output window, operand 0, single buffered']
    %8 = vsyncpa [#allocation3], 0
    %9 = vsyncpa [#allocation6], 0
    %10 = vsyncpa [#allocation4], 0
    // Predicated region
    $region2: #{tpu_custom_call.1} parent=1 // pred_check
      _
    $region3: #{tpu_custom_call.1} parent=1 // pred_check_branch
      %12 = sbr.rel (0) target = $region5
    $region4: #{tpu_custom_call.1} parent=1 // pred_region
      %14 = vsyncadd [#allocation3], 0
      %s15 = sshll.u32 %s0, 4
      %s16 = int_to_ptr.hbm [resolvable:$true] %s15
      %s17 = sshll.u32 [#allocation2], 4
      %s18 = int_to_ptr.vmem [resolvable:$true] %s17
      %23 = dma.hbm_to_vmem [thread:$0]  %s16, 1024, %s18, [#allocation3], 128, 128, 8
    $region5: #{tpu_custom_call.1} parent=1 // pred_fallthru
      _
    // Predicated region
    $region6: #{tpu_custom_call.1} parent=1 // pred_check
      _
    $region7: #{tpu_custom_call.1} parent=1 // pred_check_branch
      %25 = sbr.rel (0) target = $region9
    $region8: #{tpu_custom_call.1} parent=1 // pred_region
      %27 = vsyncadd [#allocation6], 0
      %s28 = sshll.u32 %s1, 4
      %s29 = int_to_ptr.hbm [resolvable:$true] %s28
      %s30 = sshll.u32 [#allocation5], 4
      %s31 = int_to_ptr.vmem [resolvable:$true] %s30
      %36 = dma.hbm_to_vmem [thread:$0]  %s29, 1024, %s31, [#allocation6], 128, 128, 8
    $region9: #{tpu_custom_call.1} parent=1 // pred_fallthru
      _
    // Predicated region
    $region10: #{tpu_custom_call.1} parent=1 // pred_check
      _
    $region11: #{tpu_custom_call.1} parent=1 // pred_check_branch
      %38 = sbr.rel (0) target = $region13
    $region12: #{tpu_custom_call.1} parent=1 // pred_region
      %40 = vsyncadd [#allocation6], 0
      %s41 = sshll.u32 %s2, 4
      %s42 = int_to_ptr.hbm [resolvable:$true] %s41
      %s43 = sshll.u32 [#allocation7], 4
      %s44 = int_to_ptr.vmem [resolvable:$true] %s43
      %49 = dma.hbm_to_vmem [thread:$0]  %s42, 1024, %s44, [#allocation6], 128, 128, 8
    $region13: #{tpu_custom_call.1} parent=1 // pred_fallthru
      _
    // Predicated region
    $region14: #{tpu_custom_call.1} parent=1 // pred_check
      _
    $region15: #{tpu_custom_call.1} parent=1 // pred_check_branch
      %51 = sbr.rel (0) target = $region17
    $region16: #{tpu_custom_call.1} parent=1 // pred_region
      %53 = dma.done [#allocation3], 1024
    $region17: #{tpu_custom_call.1} parent=1 // pred_fallthru
      _
    // Predicated region
    $region18: #{tpu_custom_call.1} parent=1 // pred_check
      _
    $region19: #{tpu_custom_call.1} parent=1 // pred_check_branch
      %55 = sbr.rel (0) target = $region21
    $region20: #{tpu_custom_call.1} parent=1 // pred_region
      %57 = dma.done [#allocation6], 1024
    $region21: #{tpu_custom_call.1} parent=1 // pred_fallthru
      _
    // Predicated region
    $region22: #{tpu_custom_call.1} parent=1 // pred_check
      _
    $region23: #{tpu_custom_call.1} parent=1 // pred_check_branch
      %59 = sbr.rel (0) target = $region25
    $region24: #{tpu_custom_call.1} parent=1 // pred_region
      %61 = dma.done [#allocation6], 1024
    $region25: #{tpu_custom_call.1} parent=1 // pred_fallthru
      _
    %v62 = vlaneseq
    %v63 = vshrl.u32 %v62, 7
    %v64 = vadd.s32 %v63, 8
    %v65 = vlaneseq
    %v66 = vand.u32 %v65, 127
    %vm67 = vcmp.eq.s32.totalorder %v63, 0
    %vm68 = vcmp.eq.s32.totalorder %v64, 0
    %vm69 = vcmp.eq.s32.totalorder %v63, 15
    %vm70 = vcmp.eq.s32.totalorder %v64, 15
    %vm71 = vcmp.lt.s32.totalorder %v66, 0
    %v72 = vsub.s32 0, %v66
    %v73 = vsel %vm71, %v72, %v66
    %v74 = vshrl.u32 %v73, 4
    %v75 = vand.u32 %v73, 15
    %v76 = vsub.s32 0, %v75
    %v77 = vsel %vm71, %v76, %v75
    %vm78 = vcmp.ne.s32.totalorder %v77, 0
    %vm79 = vcmp.lt.s32.totalorder %v77, 0
    %vm80 = vmand %vm79, %vm78
    %v81 = vadd.s32 %v77, 16
    %v82 = vsel %vm80, %v81, %v77
    %vm83 = vcmp.eq.s32.totalorder %v82, 0
    %vm84 = vcmp.eq.s32.totalorder %v82, 15
    %v85 = vld [vmem:[#allocation2] sm:$0xff]
    %v86 = vld [vmem:[#allocation2 + $0x8] sm:$0xff]
    %v87 = vadd.f32 %v85, 0.5
    %v88 = vadd.f32 %v86, 0.5
    %v89 = vrot.slane %v87, 7
    %v90 = vrot.slane %v88, 7
    %vm91 = vcmp.lt.s32.totalorder %v63, 1
    %v92 = vsel %vm91, %v89, %v90
    %v93 = vsel %vm91, %v90, %v89
    %v94 = vrot.slane %v87, 1
    %v95 = vrot.slane %v88, 1
    %vm96 = vcmp.lt.s32.totalorder %v63, 7
    %v97 = vsel %vm96, %v94, %v95
    %v98 = vsel %vm96, %v95, %v94
    %v99 = vsel %vm67, %v97, %v93
    %v100 = vsel %vm68, %v98, %v92
    %v101 = vadd.f32 %v87, %v99
    %v102 = vadd.f32 %v88, %v100
    %v103 = vsel %vm69, %v93, %v97
    %v104 = vsel %vm70, %v92, %v98
    %v105 = vadd.f32 %v101, %v103
    %v106 = vadd.f32 %v102, %v104
    %107 = vrot.lane.b32.xlu0 %v105, 1
    %v108 = vpop.permute.xlu0 %107
    %109 = vrot.lane.b32.xlu0 %v106, 1
    %v110 = vpop.permute.xlu0 %109
    %111 = vrot.lane.b32.xlu0 %v105, 127
    %v112 = vpop.permute.xlu0 %111
    %113 = vrot.lane.b32.xlu0 %v106, 127
    %v114 = vpop.permute.xlu0 %113
    %v115 = vsel %vm83, %v112, %v108
    %v116 = vsel %vm83, %v114, %v110
    %v117 = vadd.f32 %v105, %v115
    %v118 = vadd.f32 %v106, %v116
    %v119 = vsel %vm84, %v108, %v112
    %v120 = vsel %vm84, %v110, %v114
    %v121 = vadd.f32 %v117, %v119
    %v122 = vadd.f32 %v118, %v120
    %v123 = vmul.f32 %v121, 0.11111111
    %v124 = vmul.f32 %v122, 0.11111111
    %v125 = vmul.f32 %v123, %v123
    %v126 = vmul.f32 %v124, %v124
    %v127 = vadd.f32 %v123, %v123
    %v128 = vadd.f32 %v124, %v124
    %v129 = vadd.f32 %v125, 0.0001
    %v130 = vadd.f32 %v126, 0.0001
    %v131 = vmul.f32 %v87, %v87
    %v132 = vmul.f32 %v88, %v88
    %v133 = vrot.slane %v131, 7
    %v134 = vrot.slane %v132, 7
    %v135 = vsel %vm91, %v133, %v134
    %v136 = vsel %vm91, %v134, %v133
    %v137 = vrot.slane %v131, 1
    %v138 = vrot.slane %v132, 1
    %v139 = vsel %vm96, %v137, %v138
    %v140 = vsel %vm96, %v138, %v137
    %v141 = vsel %vm67, %v139, %v136
    %v142 = vsel %vm68, %v140, %v135
    %v143 = vadd.f32 %v131, %v141
    %v144 = vadd.f32 %v132, %v142
    %v145 = vsel %vm69, %v136, %v139
    %v146 = vsel %vm70, %v135, %v140
    %v147 = vadd.f32 %v143, %v145
    %v148 = vadd.f32 %v144, %v146
    %149 = vrot.lane.b32.xlu0 %v147, 1
    %v150 = vpop.permute.xlu0 %149
    %151 = vrot.lane.b32.xlu0 %v148, 1
    %v152 = vpop.permute.xlu0 %151
    %153 = vrot.lane.b32.xlu0 %v147, 127
    %v154 = vpop.permute.xlu0 %153
    %155 = vrot.lane.b32.xlu0 %v148, 127
    %v156 = vpop.permute.xlu0 %155
    %v157 = vsel %vm83, %v154, %v150
    %v158 = vsel %vm83, %v156, %v152
    %v159 = vadd.f32 %v147, %v157
    %v160 = vadd.f32 %v148, %v158
    %v161 = vsel %vm84, %v150, %v154
    %v162 = vsel %vm84, %v152, %v156
    %v163 = vadd.f32 %v159, %v161
    %v164 = vadd.f32 %v160, %v162
    %v165 = vmul.f32 %v163, 0.11111111
    %v166 = vmul.f32 %v164, 0.11111111
    %v167 = vsub.f32 %v165, %v125
    %v168 = vsub.f32 %v166, %v126
    %v169 = vadd.f32 %v167, 0.0009
    %v170 = vadd.f32 %v168, 0.0009
    %s171 = scalar_lea.vmem [#allocation2], 16
    %v172 = vld [vmem:[%s171] sm:$0xff]
    %v173 = vld [vmem:[%s171 + $0x8] sm:$0xff]
    %v174 = vadd.f32 %v172, 0.5
    %v175 = vadd.f32 %v173, 0.5
    %v176 = vrot.slane %v174, 7
    %v177 = vrot.slane %v175, 7
    %v178 = vsel %vm91, %v176, %v177
    %v179 = vsel %vm91, %v177, %v176
    %v180 = vrot.slane %v174, 1
    %v181 = vrot.slane %v175, 1
    %v182 = vsel %vm96, %v180, %v181
    %v183 = vsel %vm96, %v181, %v180
    %v184 = vsel %vm67, %v182, %v179
    %v185 = vsel %vm68, %v183, %v178
    %v186 = vadd.f32 %v174, %v184
    %v187 = vadd.f32 %v175, %v185
    %v188 = vsel %vm69, %v179, %v182
    %v189 = vsel %vm70, %v178, %v183
    %v190 = vadd.f32 %v186, %v188
    %v191 = vadd.f32 %v187, %v189
    %192 = vrot.lane.b32.xlu0 %v190, 1
    %v193 = vpop.permute.xlu0 %192
    %194 = vrot.lane.b32.xlu0 %v191, 1
    %v195 = vpop.permute.xlu0 %194
    %196 = vrot.lane.b32.xlu0 %v190, 127
    %v197 = vpop.permute.xlu0 %196
    %198 = vrot.lane.b32.xlu0 %v191, 127
    %v199 = vpop.permute.xlu0 %198
    %v200 = vsel %vm83, %v197, %v193
    %v201 = vsel %vm83, %v199, %v195
    %v202 = vadd.f32 %v190, %v200
    %v203 = vadd.f32 %v191, %v201
    %v204 = vsel %vm84, %v193, %v197
    %v205 = vsel %vm84, %v195, %v199
    %v206 = vadd.f32 %v202, %v204
    %v207 = vadd.f32 %v203, %v205
    %v208 = vmul.f32 %v206, 0.11111111
    %v209 = vmul.f32 %v207, 0.11111111
    %v210 = vmul.f32 %v208, %v208
    %v211 = vmul.f32 %v209, %v209
    %v212 = vadd.f32 %v208, %v208
    %v213 = vadd.f32 %v209, %v209
    %v214 = vadd.f32 %v210, 0.0001
    %v215 = vadd.f32 %v211, 0.0001
    %v216 = vmul.f32 %v174, %v174
    %v217 = vmul.f32 %v175, %v175
    %v218 = vrot.slane %v216, 7
    %v219 = vrot.slane %v217, 7
    %v220 = vsel %vm91, %v218, %v219
    %v221 = vsel %vm91, %v219, %v218
    %v222 = vrot.slane %v216, 1
    %v223 = vrot.slane %v217, 1
    %v224 = vsel %vm96, %v222, %v223
    %v225 = vsel %vm96, %v223, %v222
    %v226 = vsel %vm67, %v224, %v221
    %v227 = vsel %vm68, %v225, %v220
    %v228 = vadd.f32 %v216, %v226
    %v229 = vadd.f32 %v217, %v227
    %v230 = vsel %vm69, %v221, %v224
    %v231 = vsel %vm70, %v220, %v225
    %v232 = vadd.f32 %v228, %v230
    %v233 = vadd.f32 %v229, %v231
    %234 = vrot.lane.b32.xlu0 %v232, 1
    %v235 = vpop.permute.xlu0 %234
    %236 = vrot.lane.b32.xlu0 %v233, 1
    %v237 = vpop.permute.xlu0 %236
    %238 = vrot.lane.b32.xlu0 %v232, 127
    %v239 = vpop.permute.xlu0 %238
    %240 = vrot.lane.b32.xlu0 %v233, 127
    %v241 = vpop.permute.xlu0 %240
    %v242 = vsel %vm83, %v239, %v235
    %v243 = vsel %vm83, %v241, %v237
    %v244 = vadd.f32 %v232, %v242
    %v245 = vadd.f32 %v233, %v243
    %v246 = vsel %vm84, %v235, %v239
    %v247 = vsel %vm84, %v237, %v241
    %v248 = vadd.f32 %v244, %v246
    %v249 = vadd.f32 %v245, %v247
    %v250 = vmul.f32 %v248, 0.11111111
    %v251 = vmul.f32 %v249, 0.11111111
    %v252 = vsub.f32 %v250, %v210
    %v253 = vsub.f32 %v251, %v211
    %v254 = vadd.f32 %v252, 0.0009
    %v255 = vadd.f32 %v253, 0.0009
    %s256 = scalar_lea.vmem [#allocation2], 32
    %v257 = vld [vmem:[%s256] sm:$0xff]
    %v258 = vld [vmem:[%s256 + $0x8] sm:$0xff]
    %v259 = vadd.f32 %v257, 0.5
    %v260 = vadd.f32 %v258, 0.5
    %v261 = vrot.slane %v259, 7
    %v262 = vrot.slane %v260, 7
    %v263 = vsel %vm91, %v261, %v262
    %v264 = vsel %vm91, %v262, %v261
    %v265 = vrot.slane %v259, 1
    %v266 = vrot.slane %v260, 1
    %v267 = vsel %vm96, %v265, %v266
    %v268 = vsel %vm96, %v266, %v265
    %v269 = vsel %vm67, %v267, %v264
    %v270 = vsel %vm68, %v268, %v263
    %v271 = vadd.f32 %v259, %v269
    %v272 = vadd.f32 %v260, %v270
    %v273 = vsel %vm69, %v264, %v267
    %v274 = vsel %vm70, %v263, %v268
    %v275 = vadd.f32 %v271, %v273
    %v276 = vadd.f32 %v272, %v274
    %277 = vrot.lane.b32.xlu0 %v275, 1
    %v278 = vpop.permute.xlu0 %277
    %279 = vrot.lane.b32.xlu0 %v276, 1
    %v280 = vpop.permute.xlu0 %279
    %281 = vrot.lane.b32.xlu0 %v275, 127
    %v282 = vpop.permute.xlu0 %281
    %283 = vrot.lane.b32.xlu0 %v276, 127
    %v284 = vpop.permute.xlu0 %283
    %v285 = vsel %vm83, %v282, %v278
    %v286 = vsel %vm83, %v284, %v280
    %v287 = vadd.f32 %v275, %v285
    %v288 = vadd.f32 %v276, %v286
    %v289 = vsel %vm84, %v278, %v282
    %v290 = vsel %vm84, %v280, %v284
    %v291 = vadd.f32 %v287, %v289
    %v292 = vadd.f32 %v288, %v290
    %v293 = vmul.f32 %v291, 0.11111111
    %v294 = vmul.f32 %v292, 0.11111111
    %v295 = vmul.f32 %v293, %v293
    %v296 = vmul.f32 %v294, %v294
    %v297 = vadd.f32 %v293, %v293
    %v298 = vadd.f32 %v294, %v294
    %v299 = vadd.f32 %v295, 0.0001
    %v300 = vadd.f32 %v296, 0.0001
    %v301 = vmul.f32 %v259, %v259
    %v302 = vmul.f32 %v260, %v260
    %v303 = vrot.slane %v301, 7
    %v304 = vrot.slane %v302, 7
    %v305 = vsel %vm91, %v303, %v304
    %v306 = vsel %vm91, %v304, %v303
    %v307 = vrot.slane %v301, 1
    %v308 = vrot.slane %v302, 1
    %v309 = vsel %vm96, %v307, %v308
    %v310 = vsel %vm96, %v308, %v307
    %v311 = vsel %vm67, %v309, %v306
    %v312 = vsel %vm68, %v310, %v305
    %v313 = vadd.f32 %v301, %v311
    %v314 = vadd.f32 %v302, %v312
    %v315 = vsel %vm69, %v306, %v309
    %v316 = vsel %vm70, %v305, %v310
    %v317 = vadd.f32 %v313, %v315
    %v318 = vadd.f32 %v314, %v316
    %319 = vrot.lane.b32.xlu0 %v317, 1
    %v320 = vpop.permute.xlu0 %319
    %321 = vrot.lane.b32.xlu0 %v318, 1
    %v322 = vpop.permute.xlu0 %321
    %323 = vrot.lane.b32.xlu0 %v317, 127
    %v324 = vpop.permute.xlu0 %323
    %325 = vrot.lane.b32.xlu0 %v318, 127
    %v326 = vpop.permute.xlu0 %325
    %v327 = vsel %vm83, %v324, %v320
    %v328 = vsel %vm83, %v326, %v322
    %v329 = vadd.f32 %v317, %v327
    %v330 = vadd.f32 %v318, %v328
    %v331 = vsel %vm84, %v320, %v324
    %v332 = vsel %vm84, %v322, %v326
    %v333 = vadd.f32 %v329, %v331
    %v334 = vadd.f32 %v330, %v332
    %v335 = vmul.f32 %v333, 0.11111111
    %v336 = vmul.f32 %v334, 0.11111111
    %v337 = vsub.f32 %v335, %v295
    %v338 = vsub.f32 %v336, %v296
    %v339 = vadd.f32 %v337, 0.0009
    %v340 = vadd.f32 %v338, 0.0009
    %s341 = scalar_lea.vmem [#allocation2], 48
    %v342 = vld [vmem:[%s341] sm:$0xff]
    %v343 = vld [vmem:[%s341 + $0x8] sm:$0xff]
    %v344 = vadd.f32 %v342, 0.5
    %v345 = vadd.f32 %v343, 0.5
    %v346 = vrot.slane %v344, 7
    %v347 = vrot.slane %v345, 7
    %v348 = vsel %vm91, %v346, %v347
    %v349 = vsel %vm91, %v347, %v346
    %v350 = vrot.slane %v344, 1
    %v351 = vrot.slane %v345, 1
    %v352 = vsel %vm96, %v350, %v351
    %v353 = vsel %vm96, %v351, %v350
    %v354 = vsel %vm67, %v352, %v349
    %v355 = vsel %vm68, %v353, %v348
    %v356 = vadd.f32 %v344, %v354
    %v357 = vadd.f32 %v345, %v355
    %v358 = vsel %vm69, %v349, %v352
    %v359 = vsel %vm70, %v348, %v353
    %v360 = vadd.f32 %v356, %v358
    %v361 = vadd.f32 %v357, %v359
    %362 = vrot.lane.b32.xlu0 %v360, 1
    %v363 = vpop.permute.xlu0 %362
    %364 = vrot.lane.b32.xlu0 %v361, 1
    %v365 = vpop.permute.xlu0 %364
    %366 = vrot.lane.b32.xlu0 %v360, 127
    %v367 = vpop.permute.xlu0 %366
    %368 = vrot.lane.b32.xlu0 %v361, 127
    %v369 = vpop.permute.xlu0 %368
    %v370 = vsel %vm83, %v367, %v363
    %v371 = vsel %vm83, %v369, %v365
    %v372 = vadd.f32 %v360, %v370
    %v373 = vadd.f32 %v361, %v371
    %v374 = vsel %vm84, %v363, %v367
    %v375 = vsel %vm84, %v365, %v369
    %v376 = vadd.f32 %v372, %v374
    %v377 = vadd.f32 %v373, %v375
    %v378 = vmul.f32 %v376, 0.11111111
    %v379 = vmul.f32 %v377, 0.11111111
    %v380 = vmul.f32 %v378, %v378
    %v381 = vmul.f32 %v379, %v379
    %v382 = vadd.f32 %v378, %v378
    %v383 = vadd.f32 %v379, %v379
    %v384 = vadd.f32 %v380, 0.0001
    %v385 = vadd.f32 %v381, 0.0001
    %v386 = vmul.f32 %v344, %v344
    %v387 = vmul.f32 %v345, %v345
    %v388 = vrot.slane %v386, 7
    %v389 = vrot.slane %v387, 7
    %v390 = vsel %vm91, %v388, %v389
    %v391 = vsel %vm91, %v389, %v388
    %v392 = vrot.slane %v386, 1
    %v393 = vrot.slane %v387, 1
    %v394 = vsel %vm96, %v392, %v393
    %v395 = vsel %vm96, %v393, %v392
    %v396 = vsel %vm67, %v394, %v391
    %v397 = vsel %vm68, %v395, %v390
    %v398 = vadd.f32 %v386, %v396
    %v399 = vadd.f32 %v387, %v397
    %v400 = vsel %vm69, %v391, %v394
    %v401 = vsel %vm70, %v390, %v395
    %v402 = vadd.f32 %v398, %v400
    %v403 = vadd.f32 %v399, %v401
    %404 = vrot.lane.b32.xlu0 %v402, 1
    %v405 = vpop.permute.xlu0 %404
    %406 = vrot.lane.b32.xlu0 %v403, 1
    %v407 = vpop.permute.xlu0 %406
    %408 = vrot.lane.b32.xlu0 %v402, 127
    %v409 = vpop.permute.xlu0 %408
    %410 = vrot.lane.b32.xlu0 %v403, 127
    %v411 = vpop.permute.xlu0 %410
    %v412 = vsel %vm83, %v409, %v405
    %v413 = vsel %vm83, %v411, %v407
    %v414 = vadd.f32 %v402, %v412
    %v415 = vadd.f32 %v403, %v413
    %v416 = vsel %vm84, %v405, %v409
    %v417 = vsel %vm84, %v407, %v411
    %v418 = vadd.f32 %v414, %v416
    %v419 = vadd.f32 %v415, %v417
    %v420 = vmul.f32 %v418, 0.11111111
    %v421 = vmul.f32 %v419, 0.11111111
    %v422 = vsub.f32 %v420, %v380
    %v423 = vsub.f32 %v421, %v381
    %v424 = vadd.f32 %v422, 0.0009
    %v425 = vadd.f32 %v423, 0.0009
    %v426 = vld [vmem:[#allocation5] sm:$0xff]
    %v427 = vld [vmem:[#allocation5 + $0x8] sm:$0xff]
    %s428 = scalar_lea.vmem [#allocation5], 16
    %v429 = vld [vmem:[%s428] sm:$0xff]
    %v430 = vld [vmem:[%s428 + $0x8] sm:$0xff]
    %s431 = scalar_lea.vmem [#allocation5], 32
    %v432 = vld [vmem:[%s431] sm:$0xff]
    %v433 = vld [vmem:[%s431 + $0x8] sm:$0xff]
    %s434 = scalar_lea.vmem [#allocation5], 48
    %v435 = vld [vmem:[%s434] sm:$0xff]
    %v436 = vld [vmem:[%s434 + $0x8] sm:$0xff]
    %vm437 = vcmp.eq.f32.partialorder %v426, 0.0
    %vm438 = vcmp.eq.f32.partialorder %v427, 0.0
    %vm439 = vcmp.eq.f32.partialorder %v429, 0.0
    %vm440 = vcmp.eq.f32.partialorder %v430, 0.0
    %vm441 = vmor %vm437, %vm439
    %vm442 = vmor %vm438, %vm440
    %vm443 = vcmp.eq.f32.partialorder %v432, 0.0
    %vm444 = vcmp.eq.f32.partialorder %v433, 0.0
    %vm445 = vmor %vm441, %vm443
    %vm446 = vmor %vm442, %vm444
    %vm447 = vcmp.eq.f32.partialorder %v435, 0.0
    %vm448 = vcmp.eq.f32.partialorder %v436, 0.0
    %vm449 = vmor %vm445, %vm447
    %vm450 = vmor %vm446, %vm448
    %v451 = vsub.f32 %v426, 0.5
    %v452 = vsub.f32 %v427, 0.5
    %v453 = vrot.slane %v451, 7
    %v454 = vrot.slane %v452, 7
    %v455 = vsel %vm91, %v453, %v454
    %v456 = vsel %vm91, %v454, %v453
    %v457 = vrot.slane %v451, 1
    %v458 = vrot.slane %v452, 1
    %v459 = vsel %vm96, %v457, %v458
    %v460 = vsel %vm96, %v458, %v457
    %v461 = vsel %vm67, %v459, %v456
    %v462 = vsel %vm68, %v460, %v455
    %v463 = vadd.f32 %v451, %v461
    %v464 = vadd.f32 %v452, %v462
    %v465 = vsel %vm69, %v456, %v459
    %v466 = vsel %vm70, %v455, %v460
    %v467 = vadd.f32 %v463, %v465
    %v468 = vadd.f32 %v464, %v466
    %469 = vrot.lane.b32.xlu0 %v467, 1
    %v470 = vpop.permute.xlu0 %469
    %471 = vrot.lane.b32.xlu0 %v468, 1
    %v472 = vpop.permute.xlu0 %471
    %473 = vrot.lane.b32.xlu0 %v467, 127
    %v474 = vpop.permute.xlu0 %473
    %475 = vrot.lane.b32.xlu0 %v468, 127
    %v476 = vpop.permute.xlu0 %475
    %v477 = vsel %vm83, %v474, %v470
    %v478 = vsel %vm83, %v476, %v472
    %v479 = vadd.f32 %v467, %v477
    %v480 = vadd.f32 %v468, %v478
    %v481 = vsel %vm84, %v470, %v474
    %v482 = vsel %vm84, %v472, %v476
    %v483 = vadd.f32 %v479, %v481
    %v484 = vadd.f32 %v480, %v482
    %v485 = vmul.f32 %v483, 0.11111111
    %v486 = vmul.f32 %v484, 0.11111111
    %v487 = vmul.f32 %v485, %v485
    %v488 = vmul.f32 %v486, %v486
    %v489 = vmul.f32 %v451, %v451
    %v490 = vmul.f32 %v452, %v452
    %v491 = vrot.slane %v489, 7
    %v492 = vrot.slane %v490, 7
    %v493 = vsel %vm91, %v491, %v492
    %v494 = vsel %vm91, %v492, %v491
    %v495 = vrot.slane %v489, 1
    %v496 = vrot.slane %v490, 1
    %v497 = vsel %vm96, %v495, %v496
    %v498 = vsel %vm96, %v496, %v495
    %v499 = vsel %vm67, %v497, %v494
    %v500 = vsel %vm68, %v498, %v493
    %v501 = vadd.f32 %v489, %v499
    %v502 = vadd.f32 %v490, %v500
    %v503 = vsel %vm69, %v494, %v497
    %v504 = vsel %vm70, %v493, %v498
    %v505 = vadd.f32 %v501, %v503
    %v506 = vadd.f32 %v502, %v504
    %507 = vrot.lane.b32.xlu0 %v505, 1
    %v508 = vpop.permute.xlu0 %507
    %509 = vrot.lane.b32.xlu0 %v506, 1
    %v510 = vpop.permute.xlu0 %509
    %511 = vrot.lane.b32.xlu0 %v505, 127
    %v512 = vpop.permute.xlu0 %511
    %513 = vrot.lane.b32.xlu0 %v506, 127
    %v514 = vpop.permute.xlu0 %513
    %v515 = vsel %vm83, %v512, %v508
    %v516 = vsel %vm83, %v514, %v510
    %v517 = vadd.f32 %v505, %v515
    %v518 = vadd.f32 %v506, %v516
    %v519 = vsel %vm84, %v508, %v512
    %v520 = vsel %vm84, %v510, %v514
    %v521 = vadd.f32 %v517, %v519
    %v522 = vadd.f32 %v518, %v520
    %v523 = vmul.f32 %v521, 0.11111111
    %v524 = vmul.f32 %v522, 0.11111111
    %v525 = vsub.f32 %v523, %v487
    %v526 = vsub.f32 %v524, %v488
    %v527 = vmul.f32 %v485, %v127
    %v528 = vmul.f32 %v486, %v128
    %v529 = vmul.f32 %v451, %v87
    %v530 = vmul.f32 %v452, %v88
    %v531 = vrot.slane %v529, 7
    %v532 = vrot.slane %v530, 7
    %v533 = vsel %vm91, %v531, %v532
    %v534 = vsel %vm91, %v532, %v531
    %v535 = vrot.slane %v529, 1
    %v536 = vrot.slane %v530, 1
    %v537 = vsel %vm96, %v535, %v536
    %v538 = vsel %vm96, %v536, %v535
    %v539 = vsel %vm67, %v537, %v534
    %v540 = vsel %vm68, %v538, %v533
    %v541 = vadd.f32 %v529, %v539
    %v542 = vadd.f32 %v530, %v540
    %v543 = vsel %vm69, %v534, %v537
    %v544 = vsel %vm70, %v533, %v538
    %v545 = vadd.f32 %v541, %v543
    %v546 = vadd.f32 %v542, %v544
    %547 = vrot.lane.b32.xlu0 %v545, 1
    %v548 = vpop.permute.xlu0 %547
    %549 = vrot.lane.b32.xlu0 %v546, 1
    %v550 = vpop.permute.xlu0 %549
    %551 = vrot.lane.b32.xlu0 %v545, 127
    %v552 = vpop.permute.xlu0 %551
    %553 = vrot.lane.b32.xlu0 %v546, 127
    %v554 = vpop.permute.xlu0 %553
    %v555 = vsel %vm83, %v552, %v548
    %v556 = vsel %vm83, %v554, %v550
    %v557 = vadd.f32 %v545, %v555
    %v558 = vadd.f32 %v546, %v556
    %v559 = vsel %vm84, %v548, %v552
    %v560 = vsel %vm84, %v550, %v554
    %v561 = vadd.f32 %v557, %v559
    %v562 = vadd.f32 %v558, %v560
    %v563 = vmul.f32 %v561, 0.22222222
    %v564 = vmul.f32 %v562, 0.22222222
    %v565 = vsub.f32 %v563, %v527
    %v566 = vsub.f32 %v564, %v528
    %v567 = vadd.f32 %v565, 0.0009
    %v568 = vadd.f32 %v566, 0.0009
    %v569 = vadd.f32 %v527, 0.0001
    %v570 = vadd.f32 %v528, 0.0001
    %v571 = vmul.f32 %v569, %v567
    %v572 = vmul.f32 %v570, %v568
    %v573 = vadd.f32 %v487, %v129
    %v574 = vadd.f32 %v488, %v130
    %v575 = vadd.f32 %v525, %v169
    %v576 = vadd.f32 %v526, %v170
    %v577 = vmul.f32 %v573, %v575
    %v578 = vmul.f32 %v574, %v576
    %v579 = vrcp.pop %v577
    %v580 = vrcp.pop %v578
    %v581 = vmul.f32 %v571, %v579
    %v582 = vmul.f32 %v572, %v580
    %v583 = vsub.f32 1.0, %v581
    %v584 = vsub.f32 1.0, %v582
    %v585 = vmul.f32 %v583, 0.5
    %v586 = vmul.f32 %v584, 0.5
    %v587 = vmax.f32 %v585, 0.0
    %v588 = vmax.f32 %v586, 0.0
    %v589 = vmin.f32 %v587, 1.0
    %v590 = vmin.f32 %v588, 1.0
    %v591 = vadd.f32 %v589, 0.0
    %v592 = vadd.f32 %v590, 0.0
    %v593 = vsub.f32 %v429, 0.5
    %v594 = vsub.f32 %v430, 0.5
    %v595 = vrot.slane %v593, 7
    %v596 = vrot.slane %v594, 7
    %v597 = vsel %vm91, %v595, %v596
    %v598 = vsel %vm91, %v596, %v595
    %v599 = vrot.slane %v593, 1
    %v600 = vrot.slane %v594, 1
    %v601 = vsel %vm96, %v599, %v600
    %v602 = vsel %vm96, %v600, %v599
    %v603 = vsel %vm67, %v601, %v598
    %v604 = vsel %vm68, %v602, %v597
    %v605 = vadd.f32 %v593, %v603
    %v606 = vadd.f32 %v594, %v604
    %v607 = vsel %vm69, %v598, %v601
    %v608 = vsel %vm70, %v597, %v602
    %v609 = vadd.f32 %v605, %v607
    %v610 = vadd.f32 %v606, %v608
    %611 = vrot.lane.b32.xlu0 %v609, 1
    %v612 = vpop.permute.xlu0 %611
    %613 = vrot.lane.b32.xlu0 %v610, 1
    %v614 = vpop.permute.xlu0 %613
    %615 = vrot.lane.b32.xlu0 %v609, 127
    %v616 = vpop.permute.xlu0 %615
    %617 = vrot.lane.b32.xlu0 %v610, 127
    %v618 = vpop.permute.xlu0 %617
    %v619 = vsel %vm83, %v616, %v612
    %v620 = vsel %vm83, %v618, %v614
    %v621 = vadd.f32 %v609, %v619
    %v622 = vadd.f32 %v610, %v620
    %v623 = vsel %vm84, %v612, %v616
    %v624 = vsel %vm84, %v614, %v618
    %v625 = vadd.f32 %v621, %v623
    %v626 = vadd.f32 %v622, %v624
    %v627 = vmul.f32 %v625, 0.11111111
    %v628 = vmul.f32 %v626, 0.11111111
    %v629 = vmul.f32 %v627, %v627
    %v630 = vmul.f32 %v628, %v628
    %v631 = vmul.f32 %v593, %v593
    %v632 = vmul.f32 %v594, %v594
    %v633 = vrot.slane %v631, 7
    %v634 = vrot.slane %v632, 7
    %v635 = vsel %vm91, %v633, %v634
    %v636 = vsel %vm91, %v634, %v633
    %v637 = vrot.slane %v631, 1
    %v638 = vrot.slane %v632, 1
    %v639 = vsel %vm96, %v637, %v638
    %v640 = vsel %vm96, %v638, %v637
    %v641 = vsel %vm67, %v639, %v636
    %v642 = vsel %vm68, %v640, %v635
    %v643 = vadd.f32 %v631, %v641
    %v644 = vadd.f32 %v632, %v642
    %v645 = vsel %vm69, %v636, %v639
    %v646 = vsel %vm70, %v635, %v640
    %v647 = vadd.f32 %v643, %v645
    %v648 = vadd.f32 %v644, %v646
    %649 = vrot.lane.b32.xlu0 %v647, 1
    %v650 = vpop.permute.xlu0 %649
    %651 = vrot.lane.b32.xlu0 %v648, 1
    %v652 = vpop.permute.xlu0 %651
    %653 = vrot.lane.b32.xlu0 %v647, 127
    %v654 = vpop.permute.xlu0 %653
    %655 = vrot.lane.b32.xlu0 %v648, 127
    %v656 = vpop.permute.xlu0 %655
    %v657 = vsel %vm83, %v654, %v650
    %v658 = vsel %vm83, %v656, %v652
    %v659 = vadd.f32 %v647, %v657
    %v660 = vadd.f32 %v648, %v658
    %v661 = vsel %vm84, %v650, %v654
    %v662 = vsel %vm84, %v652, %v656
    %v663 = vadd.f32 %v659, %v661
    %v664 = vadd.f32 %v660, %v662
    %v665 = vmul.f32 %v663, 0.11111111
    %v666 = vmul.f32 %v664, 0.11111111
    %v667 = vsub.f32 %v665, %v629
    %v668 = vsub.f32 %v666, %v630
    %v669 = vmul.f32 %v627, %v212
    %v670 = vmul.f32 %v628, %v213
    %v671 = vmul.f32 %v593, %v174
    %v672 = vmul.f32 %v594, %v175
    %v673 = vrot.slane %v671, 7
    %v674 = vrot.slane %v672, 7
    %v675 = vsel %vm91, %v673, %v674
    %v676 = vsel %vm91, %v674, %v673
    %v677 = vrot.slane %v671, 1
    %v678 = vrot.slane %v672, 1
    %v679 = vsel %vm96, %v677, %v678
    %v680 = vsel %vm96, %v678, %v677
    %v681 = vsel %vm67, %v679, %v676
    %v682 = vsel %vm68, %v680, %v675
    %v683 = vadd.f32 %v671, %v681
    %v684 = vadd.f32 %v672, %v682
    %v685 = vsel %vm69, %v676, %v679
    %v686 = vsel %vm70, %v675, %v680
    %v687 = vadd.f32 %v683, %v685
    %v688 = vadd.f32 %v684, %v686
    %689 = vrot.lane.b32.xlu0 %v687, 1
    %v690 = vpop.permute.xlu0 %689
    %691 = vrot.lane.b32.xlu0 %v688, 1
    %v692 = vpop.permute.xlu0 %691
    %693 = vrot.lane.b32.xlu0 %v687, 127
    %v694 = vpop.permute.xlu0 %693
    %695 = vrot.lane.b32.xlu0 %v688, 127
    %v696 = vpop.permute.xlu0 %695
    %v697 = vsel %vm83, %v694, %v690
    %v698 = vsel %vm83, %v696, %v692
    %v699 = vadd.f32 %v687, %v697
    %v700 = vadd.f32 %v688, %v698
    %v701 = vsel %vm84, %v690, %v694
    %v702 = vsel %vm84, %v692, %v696
    %v703 = vadd.f32 %v699, %v701
    %v704 = vadd.f32 %v700, %v702
    %v705 = vmul.f32 %v703, 0.22222222
    %v706 = vmul.f32 %v704, 0.22222222
    %v707 = vsub.f32 %v705, %v669
    %v708 = vsub.f32 %v706, %v670
    %v709 = vadd.f32 %v707, 0.0009
    %v710 = vadd.f32 %v708, 0.0009
    %v711 = vadd.f32 %v669, 0.0001
    %v712 = vadd.f32 %v670, 0.0001
    %v713 = vmul.f32 %v711, %v709
    %v714 = vmul.f32 %v712, %v710
    %v715 = vadd.f32 %v629, %v214
    %v716 = vadd.f32 %v630, %v215
    %v717 = vadd.f32 %v667, %v254
    %v718 = vadd.f32 %v668, %v255
    %v719 = vmul.f32 %v715, %v717
    %v720 = vmul.f32 %v716, %v718
    %v721 = vrcp.pop %v719
    %v722 = vrcp.pop %v720
    %v723 = vmul.f32 %v713, %v721
    %v724 = vmul.f32 %v714, %v722
    %v725 = vsub.f32 1.0, %v723
    %v726 = vsub.f32 1.0, %v724
    %v727 = vmul.f32 %v725, 0.5
    %v728 = vmul.f32 %v726, 0.5
    %v729 = vmax.f32 %v727, 0.0
    %v730 = vmax.f32 %v728, 0.0
    %v731 = vmin.f32 %v729, 1.0
    %v732 = vmin.f32 %v730, 1.0
    %v733 = vadd.f32 %v591, %v731
    %v734 = vadd.f32 %v592, %v732
    %v735 = vsub.f32 %v432, 0.5
    %v736 = vsub.f32 %v433, 0.5
    %v737 = vrot.slane %v735, 7
    %v738 = vrot.slane %v736, 7
    %v739 = vsel %vm91, %v737, %v738
    %v740 = vsel %vm91, %v738, %v737
    %v741 = vrot.slane %v735, 1
    %v742 = vrot.slane %v736, 1
    %v743 = vsel %vm96, %v741, %v742
    %v744 = vsel %vm96, %v742, %v741
    %v745 = vsel %vm67, %v743, %v740
    %v746 = vsel %vm68, %v744, %v739
    %v747 = vadd.f32 %v735, %v745
    %v748 = vadd.f32 %v736, %v746
    %v749 = vsel %vm69, %v740, %v743
    %v750 = vsel %vm70, %v739, %v744
    %v751 = vadd.f32 %v747, %v749
    %v752 = vadd.f32 %v748, %v750
    %753 = vrot.lane.b32.xlu0 %v751, 1
    %v754 = vpop.permute.xlu0 %753
    %755 = vrot.lane.b32.xlu0 %v752, 1
    %v756 = vpop.permute.xlu0 %755
    %757 = vrot.lane.b32.xlu0 %v751, 127
    %v758 = vpop.permute.xlu0 %757
    %759 = vrot.lane.b32.xlu0 %v752, 127
    %v760 = vpop.permute.xlu0 %759
    %v761 = vsel %vm83, %v758, %v754
    %v762 = vsel %vm83, %v760, %v756
    %v763 = vadd.f32 %v751, %v761
    %v764 = vadd.f32 %v752, %v762
    %v765 = vsel %vm84, %v754, %v758
    %v766 = vsel %vm84, %v756, %v760
    %v767 = vadd.f32 %v763, %v765
    %v768 = vadd.f32 %v764, %v766
    %v769 = vmul.f32 %v767, 0.11111111
    %v770 = vmul.f32 %v768, 0.11111111
    %v771 = vmul.f32 %v769, %v769
    %v772 = vmul.f32 %v770, %v770
    %v773 = vmul.f32 %v735, %v735
    %v774 = vmul.f32 %v736, %v736
    %v775 = vrot.slane %v773, 7
    %v776 = vrot.slane %v774, 7
    %v777 = vsel %vm91, %v775, %v776
    %v778 = vsel %vm91, %v776, %v775
    %v779 = vrot.slane %v773, 1
    %v780 = vrot.slane %v774, 1
    %v781 = vsel %vm96, %v779, %v780
    %v782 = vsel %vm96, %v780, %v779
    %v783 = vsel %vm67, %v781, %v778
    %v784 = vsel %vm68, %v782, %v777
    %v785 = vadd.f32 %v773, %v783
    %v786 = vadd.f32 %v774, %v784
    %v787 = vsel %vm69, %v778, %v781
    %v788 = vsel %vm70, %v777, %v782
    %v789 = vadd.f32 %v785, %v787
    %v790 = vadd.f32 %v786, %v788
    %791 = vrot.lane.b32.xlu0 %v789, 1
    %v792 = vpop.permute.xlu0 %791
    %793 = vrot.lane.b32.xlu0 %v790, 1
    %v794 = vpop.permute.xlu0 %793
    %795 = vrot.lane.b32.xlu0 %v789, 127
    %v796 = vpop.permute.xlu0 %795
    %797 = vrot.lane.b32.xlu0 %v790, 127
    %v798 = vpop.permute.xlu0 %797
    %v799 = vsel %vm83, %v796, %v792
    %v800 = vsel %vm83, %v798, %v794
    %v801 = vadd.f32 %v789, %v799
    %v802 = vadd.f32 %v790, %v800
    %v803 = vsel %vm84, %v792, %v796
    %v804 = vsel %vm84, %v794, %v798
    %v805 = vadd.f32 %v801, %v803
    %v806 = vadd.f32 %v802, %v804
    %v807 = vmul.f32 %v805, 0.11111111
    %v808 = vmul.f32 %v806, 0.11111111
    %v809 = vsub.f32 %v807, %v771
    %v810 = vsub.f32 %v808, %v772
    %v811 = vmul.f32 %v769, %v297
    %v812 = vmul.f32 %v770, %v298
    %v813 = vmul.f32 %v735, %v259
    %v814 = vmul.f32 %v736, %v260
    %v815 = vrot.slane %v813, 7
    %v816 = vrot.slane %v814, 7
    %v817 = vsel %vm91, %v815, %v816
    %v818 = vsel %vm91, %v816, %v815
    %v819 = vrot.slane %v813, 1
    %v820 = vrot.slane %v814, 1
    %v821 = vsel %vm96, %v819, %v820
    %v822 = vsel %vm96, %v820, %v819
    %v823 = vsel %vm67, %v821, %v818
    %v824 = vsel %vm68, %v822, %v817
    %v825 = vadd.f32 %v813, %v823
    %v826 = vadd.f32 %v814, %v824
    %v827 = vsel %vm69, %v818, %v821
    %v828 = vsel %vm70, %v817, %v822
    %v829 = vadd.f32 %v825, %v827
    %v830 = vadd.f32 %v826, %v828
    %831 = vrot.lane.b32.xlu0 %v829, 1
    %v832 = vpop.permute.xlu0 %831
    %833 = vrot.lane.b32.xlu0 %v830, 1
    %v834 = vpop.permute.xlu0 %833
    %835 = vrot.lane.b32.xlu0 %v829, 127
    %v836 = vpop.permute.xlu0 %835
    %837 = vrot.lane.b32.xlu0 %v830, 127
    %v838 = vpop.permute.xlu0 %837
    %v839 = vsel %vm83, %v836, %v832
    %v840 = vsel %vm83, %v838, %v834
    %v841 = vadd.f32 %v829, %v839
    %v842 = vadd.f32 %v830, %v840
    %v843 = vsel %vm84, %v832, %v836
    %v844 = vsel %vm84, %v834, %v838
    %v845 = vadd.f32 %v841, %v843
    %v846 = vadd.f32 %v842, %v844
    %v847 = vmul.f32 %v845, 0.22222222
    %v848 = vmul.f32 %v846, 0.22222222
    %v849 = vsub.f32 %v847, %v811
    %v850 = vsub.f32 %v848, %v812
    %v851 = vadd.f32 %v849, 0.0009
    %v852 = vadd.f32 %v850, 0.0009
    %v853 = vadd.f32 %v811, 0.0001
    %v854 = vadd.f32 %v812, 0.0001
    %v855 = vmul.f32 %v853, %v851
    %v856 = vmul.f32 %v854, %v852
    %v857 = vadd.f32 %v771, %v299
    %v858 = vadd.f32 %v772, %v300
    %v859 = vadd.f32 %v809, %v339
    %v860 = vadd.f32 %v810, %v340
    %v861 = vmul.f32 %v857, %v859
    %v862 = vmul.f32 %v858, %v860
    %v863 = vrcp.pop %v861
    %v864 = vrcp.pop %v862
    %v865 = vmul.f32 %v855, %v863
    %v866 = vmul.f32 %v856, %v864
    %v867 = vsub.f32 1.0, %v865
    %v868 = vsub.f32 1.0, %v866
    %v869 = vmul.f32 %v867, 0.5
    %v870 = vmul.f32 %v868, 0.5
    %v871 = vmax.f32 %v869, 0.0
    %v872 = vmax.f32 %v870, 0.0
    %v873 = vmin.f32 %v871, 1.0
    %v874 = vmin.f32 %v872, 1.0
    %v875 = vadd.f32 %v733, %v873
    %v876 = vadd.f32 %v734, %v874
    %v877 = vsub.f32 %v435, 0.5
    %v878 = vsub.f32 %v436, 0.5
    %v879 = vrot.slane %v877, 7
    %v880 = vrot.slane %v878, 7
    %v881 = vsel %vm91, %v879, %v880
    %v882 = vsel %vm91, %v880, %v879
    %v883 = vrot.slane %v877, 1
    %v884 = vrot.slane %v878, 1
    %v885 = vsel %vm96, %v883, %v884
    %v886 = vsel %vm96, %v884, %v883
    %v887 = vsel %vm67, %v885, %v882
    %v888 = vsel %vm68, %v886, %v881
    %v889 = vadd.f32 %v877, %v887
    %v890 = vadd.f32 %v878, %v888
    %v891 = vsel %vm69, %v882, %v885
    %v892 = vsel %vm70, %v881, %v886
    %v893 = vadd.f32 %v889, %v891
    %v894 = vadd.f32 %v890, %v892
    %895 = vrot.lane.b32.xlu0 %v893, 1
    %v896 = vpop.permute.xlu0 %895
    %897 = vrot.lane.b32.xlu0 %v894, 1
    %v898 = vpop.permute.xlu0 %897
    %899 = vrot.lane.b32.xlu0 %v893, 127
    %v900 = vpop.permute.xlu0 %899
    %901 = vrot.lane.b32.xlu0 %v894, 127
    %v902 = vpop.permute.xlu0 %901
    %v903 = vsel %vm83, %v900, %v896
    %v904 = vsel %vm83, %v902, %v898
    %v905 = vadd.f32 %v893, %v903
    %v906 = vadd.f32 %v894, %v904
    %v907 = vsel %vm84, %v896, %v900
    %v908 = vsel %vm84, %v898, %v902
    %v909 = vadd.f32 %v905, %v907
    %v910 = vadd.f32 %v906, %v908
    %v911 = vmul.f32 %v909, 0.11111111
    %v912 = vmul.f32 %v910, 0.11111111
    %v913 = vmul.f32 %v911, %v911
    %v914 = vmul.f32 %v912, %v912
    %v915 = vmul.f32 %v877, %v877
    %v916 = vmul.f32 %v878, %v878
    %v917 = vrot.slane %v915, 7
    %v918 = vrot.slane %v916, 7
    %v919 = vsel %vm91, %v917, %v918
    %v920 = vsel %vm91, %v918, %v917
    %v921 = vrot.slane %v915, 1
    %v922 = vrot.slane %v916, 1
    %v923 = vsel %vm96, %v921, %v922
    %v924 = vsel %vm96, %v922, %v921
    %v925 = vsel %vm67, %v923, %v920
    %v926 = vsel %vm68, %v924, %v919
    %v927 = vadd.f32 %v915, %v925
    %v928 = vadd.f32 %v916, %v926
    %v929 = vsel %vm69, %v920, %v923
    %v930 = vsel %vm70, %v919, %v924
    %v931 = vadd.f32 %v927, %v929
    %v932 = vadd.f32 %v928, %v930
    %933 = vrot.lane.b32.xlu0 %v931, 1
    %v934 = vpop.permute.xlu0 %933
    %935 = vrot.lane.b32.xlu0 %v932, 1
    %v936 = vpop.permute.xlu0 %935
    %937 = vrot.lane.b32.xlu0 %v931, 127
    %v938 = vpop.permute.xlu0 %937
    %939 = vrot.lane.b32.xlu0 %v932, 127
    %v940 = vpop.permute.xlu0 %939
    %v941 = vsel %vm83, %v938, %v934
    %v942 = vsel %vm83, %v940, %v936
    %v943 = vadd.f32 %v931, %v941
    %v944 = vadd.f32 %v932, %v942
    %v945 = vsel %vm84, %v934, %v938
    %v946 = vsel %vm84, %v936, %v940
    %v947 = vadd.f32 %v943, %v945
    %v948 = vadd.f32 %v944, %v946
    %v949 = vmul.f32 %v947, 0.11111111
    %v950 = vmul.f32 %v948, 0.11111111
    %v951 = vsub.f32 %v949, %v913
    %v952 = vsub.f32 %v950, %v914
    %v953 = vmul.f32 %v911, %v382
    %v954 = vmul.f32 %v912, %v383
    %v955 = vmul.f32 %v877, %v344
    %v956 = vmul.f32 %v878, %v345
    %v957 = vrot.slane %v955, 7
    %v958 = vrot.slane %v956, 7
    %v959 = vsel %vm91, %v957, %v958
    %v960 = vsel %vm91, %v958, %v957
    %v961 = vrot.slane %v955, 1
    %v962 = vrot.slane %v956, 1
    %v963 = vsel %vm96, %v961, %v962
    %v964 = vsel %vm96, %v962, %v961
    %v965 = vsel %vm67, %v963, %v960
    %v966 = vsel %vm68, %v964, %v959
    %v967 = vadd.f32 %v955, %v965
    %v968 = vadd.f32 %v956, %v966
    %v969 = vsel %vm69, %v960, %v963
    %v970 = vsel %vm70, %v959, %v964
    %v971 = vadd.f32 %v967, %v969
    %v972 = vadd.f32 %v968, %v970
    %973 = vrot.lane.b32.xlu0 %v971, 1
    %v974 = vpop.permute.xlu0 %973
    %975 = vrot.lane.b32.xlu0 %v972, 1
    %v976 = vpop.permute.xlu0 %975
    %977 = vrot.lane.b32.xlu0 %v971, 127
    %v978 = vpop.permute.xlu0 %977
    %979 = vrot.lane.b32.xlu0 %v972, 127
    %v980 = vpop.permute.xlu0 %979
    %v981 = vsel %vm83, %v978, %v974
    %v982 = vsel %vm83, %v980, %v976
    %v983 = vadd.f32 %v971, %v981
    %v984 = vadd.f32 %v972, %v982
    %v985 = vsel %vm84, %v974, %v978
    %v986 = vsel %vm84, %v976, %v980
    %v987 = vadd.f32 %v983, %v985
    %v988 = vadd.f32 %v984, %v986
    %v989 = vmul.f32 %v987, 0.22222222
    %v990 = vmul.f32 %v988, 0.22222222
    %v991 = vsub.f32 %v989, %v953
    %v992 = vsub.f32 %v990, %v954
    %v993 = vadd.f32 %v991, 0.0009
    %v994 = vadd.f32 %v992, 0.0009
    %v995 = vadd.f32 %v953, 0.0001
    %v996 = vadd.f32 %v954, 0.0001
    %v997 = vmul.f32 %v995, %v993
    %v998 = vmul.f32 %v996, %v994
    %v999 = vadd.f32 %v913, %v384
    %v1000 = vadd.f32 %v914, %v385
    %v1001 = vadd.f32 %v951, %v424
    %v1002 = vadd.f32 %v952, %v425
    %v1003 = vmul.f32 %v999, %v1001
    %v1004 = vmul.f32 %v1000, %v1002
    %v1005 = vrcp.pop %v1003
    %v1006 = vrcp.pop %v1004
    %v1007 = vmul.f32 %v997, %v1005
    %v1008 = vmul.f32 %v998, %v1006
    %v1009 = vsub.f32 1.0, %v1007
    %v1010 = vsub.f32 1.0, %v1008
    %v1011 = vmul.f32 %v1009, 0.5
    %v1012 = vmul.f32 %v1010, 0.5
    %v1013 = vmax.f32 %v1011, 0.0
    %v1014 = vmax.f32 %v1012, 0.0
    %v1015 = vmin.f32 %v1013, 1.0
    %v1016 = vmin.f32 %v1014, 1.0
    %v1017 = vadd.f32 %v875, %v1015
    %v1018 = vadd.f32 %v876, %v1016
    %v1019 = vmul.f32 %v1017, 0.25
    %v1020 = vmul.f32 %v1018, 0.25
    %v1021 = vsel %vm449, inf, %v1019
    %v1022 = vsel %vm450, inf, %v1020
    %v1023 = vld [vmem:[#allocation7] sm:$0xff]
    %v1024 = vld [vmem:[#allocation7 + $0x8] sm:$0xff]
    %s1025 = scalar_lea.vmem [#allocation7], 16
    %v1026 = vld [vmem:[%s1025] sm:$0xff]
    %v1027 = vld [vmem:[%s1025 + $0x8] sm:$0xff]
    %s1028 = scalar_lea.vmem [#allocation7], 32
    %v1029 = vld [vmem:[%s1028] sm:$0xff]
    %v1030 = vld [vmem:[%s1028 + $0x8] sm:$0xff]
    %s1031 = scalar_lea.vmem [#allocation7], 48
    %v1032 = vld [vmem:[%s1031] sm:$0xff]
    %v1033 = vld [vmem:[%s1031 + $0x8] sm:$0xff]
    %vm1034 = vcmp.eq.f32.partialorder %v1023, 0.0
    %vm1035 = vcmp.eq.f32.partialorder %v1024, 0.0
    %vm1036 = vcmp.eq.f32.partialorder %v1026, 0.0
    %vm1037 = vcmp.eq.f32.partialorder %v1027, 0.0
    %vm1038 = vmor %vm1034, %vm1036
    %vm1039 = vmor %vm1035, %vm1037
    %vm1040 = vcmp.eq.f32.partialorder %v1029, 0.0
    %vm1041 = vcmp.eq.f32.partialorder %v1030, 0.0
    %vm1042 = vmor %vm1038, %vm1040
    %vm1043 = vmor %vm1039, %vm1041
    %vm1044 = vcmp.eq.f32.partialorder %v1032, 0.0
    %vm1045 = vcmp.eq.f32.partialorder %v1033, 0.0
    %vm1046 = vmor %vm1042, %vm1044
    %vm1047 = vmor %vm1043, %vm1045
    %v1048 = vsub.f32 %v1023, 0.5
    %v1049 = vsub.f32 %v1024, 0.5
    %v1050 = vrot.slane %v1048, 7
    %v1051 = vrot.slane %v1049, 7
    %v1052 = vsel %vm91, %v1050, %v1051
    %v1053 = vsel %vm91, %v1051, %v1050
    %v1054 = vrot.slane %v1048, 1
    %v1055 = vrot.slane %v1049, 1
    %v1056 = vsel %vm96, %v1054, %v1055
    %v1057 = vsel %vm96, %v1055, %v1054
    %v1058 = vsel %vm67, %v1056, %v1053
    %v1059 = vsel %vm68, %v1057, %v1052
    %v1060 = vadd.f32 %v1048, %v1058
    %v1061 = vadd.f32 %v1049, %v1059
    %v1062 = vsel %vm69, %v1053, %v1056
    %v1063 = vsel %vm70, %v1052, %v1057
    %v1064 = vadd.f32 %v1060, %v1062
    %v1065 = vadd.f32 %v1061, %v1063
    %1066 = vrot.lane.b32.xlu0 %v1064, 1
    %v1067 = vpop.permute.xlu0 %1066
    %1068 = vrot.lane.b32.xlu0 %v1065, 1
    %v1069 = vpop.permute.xlu0 %1068
    %1070 = vrot.lane.b32.xlu0 %v1064, 127
    %v1071 = vpop.permute.xlu0 %1070
    %1072 = vrot.lane.b32.xlu0 %v1065, 127
    %v1073 = vpop.permute.xlu0 %1072
    %v1074 = vsel %vm83, %v1071, %v1067
    %v1075 = vsel %vm83, %v1073, %v1069
    %v1076 = vadd.f32 %v1064, %v1074
    %v1077 = vadd.f32 %v1065, %v1075
    %v1078 = vsel %vm84, %v1067, %v1071
    %v1079 = vsel %vm84, %v1069, %v1073
    %v1080 = vadd.f32 %v1076, %v1078
    %v1081 = vadd.f32 %v1077, %v1079
    %v1082 = vmul.f32 %v1080, 0.11111111
    %v1083 = vmul.f32 %v1081, 0.11111111
    %v1084 = vmul.f32 %v1082, %v1082
    %v1085 = vmul.f32 %v1083, %v1083
    %v1086 = vmul.f32 %v1048, %v1048
    %v1087 = vmul.f32 %v1049, %v1049
    %v1088 = vrot.slane %v1086, 7
    %v1089 = vrot.slane %v1087, 7
    %v1090 = vsel %vm91, %v1088, %v1089
    %v1091 = vsel %vm91, %v1089, %v1088
    %v1092 = vrot.slane %v1086, 1
    %v1093 = vrot.slane %v1087, 1
    %v1094 = vsel %vm96, %v1092, %v1093
    %v1095 = vsel %vm96, %v1093, %v1092
    %v1096 = vsel %vm67, %v1094, %v1091
    %v1097 = vsel %vm68, %v1095, %v1090
    %v1098 = vadd.f32 %v1086, %v1096
    %v1099 = vadd.f32 %v1087, %v1097
    %v1100 = vsel %vm69, %v1091, %v1094
    %v1101 = vsel %vm70, %v1090, %v1095
    %v1102 = vadd.f32 %v1098, %v1100
    %v1103 = vadd.f32 %v1099, %v1101
    %1104 = vrot.lane.b32.xlu0 %v1102, 1
    %v1105 = vpop.permute.xlu0 %1104
    %1106 = vrot.lane.b32.xlu0 %v1103, 1
    %v1107 = vpop.permute.xlu0 %1106
    %1108 = vrot.lane.b32.xlu0 %v1102, 127
    %v1109 = vpop.permute.xlu0 %1108
    %1110 = vrot.lane.b32.xlu0 %v1103, 127
    %v1111 = vpop.permute.xlu0 %1110
    %v1112 = vsel %vm83, %v1109, %v1105
    %v1113 = vsel %vm83, %v1111, %v1107
    %v1114 = vadd.f32 %v1102, %v1112
    %v1115 = vadd.f32 %v1103, %v1113
    %v1116 = vsel %vm84, %v1105, %v1109
    %v1117 = vsel %vm84, %v1107, %v1111
    %v1118 = vadd.f32 %v1114, %v1116
    %v1119 = vadd.f32 %v1115, %v1117
    %v1120 = vmul.f32 %v1118, 0.11111111
    %v1121 = vmul.f32 %v1119, 0.11111111
    %v1122 = vsub.f32 %v1120, %v1084
    %v1123 = vsub.f32 %v1121, %v1085
    %v1124 = vmul.f32 %v1082, %v127
    %v1125 = vmul.f32 %v1083, %v128
    %v1126 = vmul.f32 %v1048, %v87
    %v1127 = vmul.f32 %v1049, %v88
    %v1128 = vrot.slane %v1126, 7
    %v1129 = vrot.slane %v1127, 7
    %v1130 = vsel %vm91, %v1128, %v1129
    %v1131 = vsel %vm91, %v1129, %v1128
    %v1132 = vrot.slane %v1126, 1
    %v1133 = vrot.slane %v1127, 1
    %v1134 = vsel %vm96, %v1132, %v1133
    %v1135 = vsel %vm96, %v1133, %v1132
    %v1136 = vsel %vm67, %v1134, %v1131
    %v1137 = vsel %vm68, %v1135, %v1130
    %v1138 = vadd.f32 %v1126, %v1136
    %v1139 = vadd.f32 %v1127, %v1137
    %v1140 = vsel %vm69, %v1131, %v1134
    %v1141 = vsel %vm70, %v1130, %v1135
    %v1142 = vadd.f32 %v1138, %v1140
    %v1143 = vadd.f32 %v1139, %v1141
    %1144 = vrot.lane.b32.xlu0 %v1142, 1
    %v1145 = vpop.permute.xlu0 %1144
    %1146 = vrot.lane.b32.xlu0 %v1143, 1
    %v1147 = vpop.permute.xlu0 %1146
    %1148 = vrot.lane.b32.xlu0 %v1142, 127
    %v1149 = vpop.permute.xlu0 %1148
    %1150 = vrot.lane.b32.xlu0 %v1143, 127
    %v1151 = vpop.permute.xlu0 %1150
    %v1152 = vsel %vm83, %v1149, %v1145
    %v1153 = vsel %vm83, %v1151, %v1147
    %v1154 = vadd.f32 %v1142, %v1152
    %v1155 = vadd.f32 %v1143, %v1153
    %v1156 = vsel %vm84, %v1145, %v1149
    %v1157 = vsel %vm84, %v1147, %v1151
    %v1158 = vadd.f32 %v1154, %v1156
    %v1159 = vadd.f32 %v1155, %v1157
    %v1160 = vmul.f32 %v1158, 0.22222222
    %v1161 = vmul.f32 %v1159, 0.22222222
    %v1162 = vsub.f32 %v1160, %v1124
    %v1163 = vsub.f32 %v1161, %v1125
    %v1164 = vadd.f32 %v1162, 0.0009
    %v1165 = vadd.f32 %v1163, 0.0009
    %v1166 = vadd.f32 %v1124, 0.0001
    %v1167 = vadd.f32 %v1125, 0.0001
    %v1168 = vmul.f32 %v1166, %v1164
    %v1169 = vmul.f32 %v1167, %v1165
    %v1170 = vadd.f32 %v1084, %v129
    %v1171 = vadd.f32 %v1085, %v130
    %v1172 = vadd.f32 %v1122, %v169
    %v1173 = vadd.f32 %v1123, %v170
    %v1174 = vmul.f32 %v1170, %v1172
    %v1175 = vmul.f32 %v1171, %v1173
    %v1176 = vrcp.pop %v1174
    %v1177 = vrcp.pop %v1175
    %v1178 = vmul.f32 %v1168, %v1176
    %v1179 = vmul.f32 %v1169, %v1177
    %v1180 = vsub.f32 1.0, %v1178
    %v1181 = vsub.f32 1.0, %v1179
    %v1182 = vmul.f32 %v1180, 0.5
    %v1183 = vmul.f32 %v1181, 0.5
    %v1184 = vmax.f32 %v1182, 0.0
    %v1185 = vmax.f32 %v1183, 0.0
    %v1186 = vmin.f32 %v1184, 1.0
    %v1187 = vmin.f32 %v1185, 1.0
    %v1188 = vadd.f32 %v1186, 0.0
    %v1189 = vadd.f32 %v1187, 0.0
    %v1190 = vsub.f32 %v1026, 0.5
    %v1191 = vsub.f32 %v1027, 0.5
    %v1192 = vrot.slane %v1190, 7
    %v1193 = vrot.slane %v1191, 7
    %v1194 = vsel %vm91, %v1192, %v1193
    %v1195 = vsel %vm91, %v1193, %v1192
    %v1196 = vrot.slane %v1190, 1
    %v1197 = vrot.slane %v1191, 1
    %v1198 = vsel %vm96, %v1196, %v1197
    %v1199 = vsel %vm96, %v1197, %v1196
    %v1200 = vsel %vm67, %v1198, %v1195
    %v1201 = vsel %vm68, %v1199, %v1194
    %v1202 = vadd.f32 %v1190, %v1200
    %v1203 = vadd.f32 %v1191, %v1201
    %v1204 = vsel %vm69, %v1195, %v1198
    %v1205 = vsel %vm70, %v1194, %v1199
    %v1206 = vadd.f32 %v1202, %v1204
    %v1207 = vadd.f32 %v1203, %v1205
    %1208 = vrot.lane.b32.xlu0 %v1206, 1
    %v1209 = vpop.permute.xlu0 %1208
    %1210 = vrot.lane.b32.xlu0 %v1207, 1
    %v1211 = vpop.permute.xlu0 %1210
    %1212 = vrot.lane.b32.xlu0 %v1206, 127
    %v1213 = vpop.permute.xlu0 %1212
    %1214 = vrot.lane.b32.xlu0 %v1207, 127
    %v1215 = vpop.permute.xlu0 %1214
    %v1216 = vsel %vm83, %v1213, %v1209
    %v1217 = vsel %vm83, %v1215, %v1211
    %v1218 = vadd.f32 %v1206, %v1216
    %v1219 = vadd.f32 %v1207, %v1217
    %v1220 = vsel %vm84, %v1209, %v1213
    %v1221 = vsel %vm84, %v1211, %v1215
    %v1222 = vadd.f32 %v1218, %v1220
    %v1223 = vadd.f32 %v1219, %v1221
    %v1224 = vmul.f32 %v1222, 0.11111111
    %v1225 = vmul.f32 %v1223, 0.11111111
    %v1226 = vmul.f32 %v1224, %v1224
    %v1227 = vmul.f32 %v1225, %v1225
    %v1228 = vmul.f32 %v1190, %v1190
    %v1229 = vmul.f32 %v1191, %v1191
    %v1230 = vrot.slane %v1228, 7
    %v1231 = vrot.slane %v1229, 7
    %v1232 = vsel %vm91, %v1230, %v1231
    %v1233 = vsel %vm91, %v1231, %v1230
    %v1234 = vrot.slane %v1228, 1
    %v1235 = vrot.slane %v1229, 1
    %v1236 = vsel %vm96, %v1234, %v1235
    %v1237 = vsel %vm96, %v1235, %v1234
    %v1238 = vsel %vm67, %v1236, %v1233
    %v1239 = vsel %vm68, %v1237, %v1232
    %v1240 = vadd.f32 %v1228, %v1238
    %v1241 = vadd.f32 %v1229, %v1239
    %v1242 = vsel %vm69, %v1233, %v1236
    %v1243 = vsel %vm70, %v1232, %v1237
    %v1244 = vadd.f32 %v1240, %v1242
    %v1245 = vadd.f32 %v1241, %v1243
    %1246 = vrot.lane.b32.xlu0 %v1244, 1
    %v1247 = vpop.permute.xlu0 %1246
    %1248 = vrot.lane.b32.xlu0 %v1245, 1
    %v1249 = vpop.permute.xlu0 %1248
    %1250 = vrot.lane.b32.xlu0 %v1244, 127
    %v1251 = vpop.permute.xlu0 %1250
    %1252 = vrot.lane.b32.xlu0 %v1245, 127
    %v1253 = vpop.permute.xlu0 %1252
    %v1254 = vsel %vm83, %v1251, %v1247
    %v1255 = vsel %vm83, %v1253, %v1249
    %v1256 = vadd.f32 %v1244, %v1254
    %v1257 = vadd.f32 %v1245, %v1255
    %v1258 = vsel %vm84, %v1247, %v1251
    %v1259 = vsel %vm84, %v1249, %v1253
    %v1260 = vadd.f32 %v1256, %v1258
    %v1261 = vadd.f32 %v1257, %v1259
    %v1262 = vmul.f32 %v1260, 0.11111111
    %v1263 = vmul.f32 %v1261, 0.11111111
    %v1264 = vsub.f32 %v1262, %v1226
    %v1265 = vsub.f32 %v1263, %v1227
    %v1266 = vmul.f32 %v1224, %v212
    %v1267 = vmul.f32 %v1225, %v213
    %v1268 = vmul.f32 %v1190, %v174
    %v1269 = vmul.f32 %v1191, %v175
    %v1270 = vrot.slane %v1268, 7
    %v1271 = vrot.slane %v1269, 7
    %v1272 = vsel %vm91, %v1270, %v1271
    %v1273 = vsel %vm91, %v1271, %v1270
    %v1274 = vrot.slane %v1268, 1
    %v1275 = vrot.slane %v1269, 1
    %v1276 = vsel %vm96, %v1274, %v1275
    %v1277 = vsel %vm96, %v1275, %v1274
    %v1278 = vsel %vm67, %v1276, %v1273
    %v1279 = vsel %vm68, %v1277, %v1272
    %v1280 = vadd.f32 %v1268, %v1278
    %v1281 = vadd.f32 %v1269, %v1279
    %v1282 = vsel %vm69, %v1273, %v1276
    %v1283 = vsel %vm70, %v1272, %v1277
    %v1284 = vadd.f32 %v1280, %v1282
    %v1285 = vadd.f32 %v1281, %v1283
    %1286 = vrot.lane.b32.xlu0 %v1284, 1
    %v1287 = vpop.permute.xlu0 %1286
    %1288 = vrot.lane.b32.xlu0 %v1285, 1
    %v1289 = vpop.permute.xlu0 %1288
    %1290 = vrot.lane.b32.xlu0 %v1284, 127
    %v1291 = vpop.permute.xlu0 %1290
    %1292 = vrot.lane.b32.xlu0 %v1285, 127
    %v1293 = vpop.permute.xlu0 %1292
    %v1294 = vsel %vm83, %v1291, %v1287
    %v1295 = vsel %vm83, %v1293, %v1289
    %v1296 = vadd.f32 %v1284, %v1294
    %v1297 = vadd.f32 %v1285, %v1295
    %v1298 = vsel %vm84, %v1287, %v1291
    %v1299 = vsel %vm84, %v1289, %v1293
    %v1300 = vadd.f32 %v1296, %v1298
    %v1301 = vadd.f32 %v1297, %v1299
    %v1302 = vmul.f32 %v1300, 0.22222222
    %v1303 = vmul.f32 %v1301, 0.22222222
    %v1304 = vsub.f32 %v1302, %v1266
    %v1305 = vsub.f32 %v1303, %v1267
    %v1306 = vadd.f32 %v1304, 0.0009
    %v1307 = vadd.f32 %v1305, 0.0009
    %v1308 = vadd.f32 %v1266, 0.0001
    %v1309 = vadd.f32 %v1267, 0.0001
    %v1310 = vmul.f32 %v1308, %v1306
    %v1311 = vmul.f32 %v1309, %v1307
    %v1312 = vadd.f32 %v1226, %v214
    %v1313 = vadd.f32 %v1227, %v215
    %v1314 = vadd.f32 %v1264, %v254
    %v1315 = vadd.f32 %v1265, %v255
    %v1316 = vmul.f32 %v1312, %v1314
    %v1317 = vmul.f32 %v1313, %v1315
    %v1318 = vrcp.pop %v1316
    %v1319 = vrcp.pop %v1317
    %v1320 = vmul.f32 %v1310, %v1318
    %v1321 = vmul.f32 %v1311, %v1319
    %v1322 = vsub.f32 1.0, %v1320
    %v1323 = vsub.f32 1.0, %v1321
    %v1324 = vmul.f32 %v1322, 0.5
    %v1325 = vmul.f32 %v1323, 0.5
    %v1326 = vmax.f32 %v1324, 0.0
    %v1327 = vmax.f32 %v1325, 0.0
    %v1328 = vmin.f32 %v1326, 1.0
    %v1329 = vmin.f32 %v1327, 1.0
    %v1330 = vadd.f32 %v1188, %v1328
    %v1331 = vadd.f32 %v1189, %v1329
    %v1332 = vsub.f32 %v1029, 0.5
    %v1333 = vsub.f32 %v1030, 0.5
    %v1334 = vrot.slane %v1332, 7
    %v1335 = vrot.slane %v1333, 7
    %v1336 = vsel %vm91, %v1334, %v1335
    %v1337 = vsel %vm91, %v1335, %v1334
    %v1338 = vrot.slane %v1332, 1
    %v1339 = vrot.slane %v1333, 1
    %v1340 = vsel %vm96, %v1338, %v1339
    %v1341 = vsel %vm96, %v1339, %v1338
    %v1342 = vsel %vm67, %v1340, %v1337
    %v1343 = vsel %vm68, %v1341, %v1336
    %v1344 = vadd.f32 %v1332, %v1342
    %v1345 = vadd.f32 %v1333, %v1343
    %v1346 = vsel %vm69, %v1337, %v1340
    %v1347 = vsel %vm70, %v1336, %v1341
    %v1348 = vadd.f32 %v1344, %v1346
    %v1349 = vadd.f32 %v1345, %v1347
    %1350 = vrot.lane.b32.xlu0 %v1348, 1
    %v1351 = vpop.permute.xlu0 %1350
    %1352 = vrot.lane.b32.xlu0 %v1349, 1
    %v1353 = vpop.permute.xlu0 %1352
    %1354 = vrot.lane.b32.xlu0 %v1348, 127
    %v1355 = vpop.permute.xlu0 %1354
    %1356 = vrot.lane.b32.xlu0 %v1349, 127
    %v1357 = vpop.permute.xlu0 %1356
    %v1358 = vsel %vm83, %v1355, %v1351
    %v1359 = vsel %vm83, %v1357, %v1353
    %v1360 = vadd.f32 %v1348, %v1358
    %v1361 = vadd.f32 %v1349, %v1359
    %v1362 = vsel %vm84, %v1351, %v1355
    %v1363 = vsel %vm84, %v1353, %v1357
    %v1364 = vadd.f32 %v1360, %v1362
    %v1365 = vadd.f32 %v1361, %v1363
    %v1366 = vmul.f32 %v1364, 0.11111111
    %v1367 = vmul.f32 %v1365, 0.11111111
    %v1368 = vmul.f32 %v1366, %v1366
    %v1369 = vmul.f32 %v1367, %v1367
    %v1370 = vmul.f32 %v1332, %v1332
    %v1371 = vmul.f32 %v1333, %v1333
    %v1372 = vrot.slane %v1370, 7
    %v1373 = vrot.slane %v1371, 7
    %v1374 = vsel %vm91, %v1372, %v1373
    %v1375 = vsel %vm91, %v1373, %v1372
    %v1376 = vrot.slane %v1370, 1
    %v1377 = vrot.slane %v1371, 1
    %v1378 = vsel %vm96, %v1376, %v1377
    %v1379 = vsel %vm96, %v1377, %v1376
    %v1380 = vsel %vm67, %v1378, %v1375
    %v1381 = vsel %vm68, %v1379, %v1374
    %v1382 = vadd.f32 %v1370, %v1380
    %v1383 = vadd.f32 %v1371, %v1381
    %v1384 = vsel %vm69, %v1375, %v1378
    %v1385 = vsel %vm70, %v1374, %v1379
    %v1386 = vadd.f32 %v1382, %v1384
    %v1387 = vadd.f32 %v1383, %v1385
    %1388 = vrot.lane.b32.xlu0 %v1386, 1
    %v1389 = vpop.permute.xlu0 %1388
    %1390 = vrot.lane.b32.xlu0 %v1387, 1
    %v1391 = vpop.permute.xlu0 %1390
    %1392 = vrot.lane.b32.xlu0 %v1386, 127
    %v1393 = vpop.permute.xlu0 %1392
    %1394 = vrot.lane.b32.xlu0 %v1387, 127
    %v1395 = vpop.permute.xlu0 %1394
    %v1396 = vsel %vm83, %v1393, %v1389
    %v1397 = vsel %vm83, %v1395, %v1391
    %v1398 = vadd.f32 %v1386, %v1396
    %v1399 = vadd.f32 %v1387, %v1397
    %v1400 = vsel %vm84, %v1389, %v1393
    %v1401 = vsel %vm84, %v1391, %v1395
    %v1402 = vadd.f32 %v1398, %v1400
    %v1403 = vadd.f32 %v1399, %v1401
    %v1404 = vmul.f32 %v1402, 0.11111111
    %v1405 = vmul.f32 %v1403, 0.11111111
    %v1406 = vsub.f32 %v1404, %v1368
    %v1407 = vsub.f32 %v1405, %v1369
    %v1408 = vmul.f32 %v1366, %v297
    %v1409 = vmul.f32 %v1367, %v298
    %v1410 = vmul.f32 %v1332, %v259
    %v1411 = vmul.f32 %v1333, %v260
    %v1412 = vrot.slane %v1410, 7
    %v1413 = vrot.slane %v1411, 7
    %v1414 = vsel %vm91, %v1412, %v1413
    %v1415 = vsel %vm91, %v1413, %v1412
    %v1416 = vrot.slane %v1410, 1
    %v1417 = vrot.slane %v1411, 1
    %v1418 = vsel %vm96, %v1416, %v1417
    %v1419 = vsel %vm96, %v1417, %v1416
    %v1420 = vsel %vm67, %v1418, %v1415
    %v1421 = vsel %vm68, %v1419, %v1414
    %v1422 = vadd.f32 %v1410, %v1420
    %v1423 = vadd.f32 %v1411, %v1421
    %v1424 = vsel %vm69, %v1415, %v1418
    %v1425 = vsel %vm70, %v1414, %v1419
    %v1426 = vadd.f32 %v1422, %v1424
    %v1427 = vadd.f32 %v1423, %v1425
    %1428 = vrot.lane.b32.xlu0 %v1426, 1
    %v1429 = vpop.permute.xlu0 %1428
    %1430 = vrot.lane.b32.xlu0 %v1427, 1
    %v1431 = vpop.permute.xlu0 %1430
    %1432 = vrot.lane.b32.xlu0 %v1426, 127
    %v1433 = vpop.permute.xlu0 %1432
    %1434 = vrot.lane.b32.xlu0 %v1427, 127
    %v1435 = vpop.permute.xlu0 %1434
    %v1436 = vsel %vm83, %v1433, %v1429
    %v1437 = vsel %vm83, %v1435, %v1431
    %v1438 = vadd.f32 %v1426, %v1436
    %v1439 = vadd.f32 %v1427, %v1437
    %v1440 = vsel %vm84, %v1429, %v1433
    %v1441 = vsel %vm84, %v1431, %v1435
    %v1442 = vadd.f32 %v1438, %v1440
    %v1443 = vadd.f32 %v1439, %v1441
    %v1444 = vmul.f32 %v1442, 0.22222222
    %v1445 = vmul.f32 %v1443, 0.22222222
    %v1446 = vsub.f32 %v1444, %v1408
    %v1447 = vsub.f32 %v1445, %v1409
    %v1448 = vadd.f32 %v1446, 0.0009
    %v1449 = vadd.f32 %v1447, 0.0009
    %v1450 = vadd.f32 %v1408, 0.0001
    %v1451 = vadd.f32 %v1409, 0.0001
    %v1452 = vmul.f32 %v1450, %v1448
    %v1453 = vmul.f32 %v1451, %v1449
    %v1454 = vadd.f32 %v1368, %v299
    %v1455 = vadd.f32 %v1369, %v300
    %v1456 = vadd.f32 %v1406, %v339
    %v1457 = vadd.f32 %v1407, %v340
    %v1458 = vmul.f32 %v1454, %v1456
    %v1459 = vmul.f32 %v1455, %v1457
    %v1460 = vrcp.pop %v1458
    %v1461 = vrcp.pop %v1459
    %v1462 = vmul.f32 %v1452, %v1460
    %v1463 = vmul.f32 %v1453, %v1461
    %v1464 = vsub.f32 1.0, %v1462
    %v1465 = vsub.f32 1.0, %v1463
    %v1466 = vmul.f32 %v1464, 0.5
    %v1467 = vmul.f32 %v1465, 0.5
    %v1468 = vmax.f32 %v1466, 0.0
    %v1469 = vmax.f32 %v1467, 0.0
    %v1470 = vmin.f32 %v1468, 1.0
    %v1471 = vmin.f32 %v1469, 1.0
    %v1472 = vadd.f32 %v1330, %v1470
    %v1473 = vadd.f32 %v1331, %v1471
    %v1474 = vsub.f32 %v1032, 0.5
    %v1475 = vsub.f32 %v1033, 0.5
    %v1476 = vrot.slane %v1474, 7
    %v1477 = vrot.slane %v1475, 7
    %v1478 = vsel %vm91, %v1476, %v1477
    %v1479 = vsel %vm91, %v1477, %v1476
    %v1480 = vrot.slane %v1474, 1
    %v1481 = vrot.slane %v1475, 1
    %v1482 = vsel %vm96, %v1480, %v1481
    %v1483 = vsel %vm96, %v1481, %v1480
    %v1484 = vsel %vm67, %v1482, %v1479
    %v1485 = vsel %vm68, %v1483, %v1478
    %v1486 = vadd.f32 %v1474, %v1484
    %v1487 = vadd.f32 %v1475, %v1485
    %v1488 = vsel %vm69, %v1479, %v1482
    %v1489 = vsel %vm70, %v1478, %v1483
    %v1490 = vadd.f32 %v1486, %v1488
    %v1491 = vadd.f32 %v1487, %v1489
    %1492 = vrot.lane.b32.xlu0 %v1490, 1
    %v1493 = vpop.permute.xlu0 %1492
    %1494 = vrot.lane.b32.xlu0 %v1491, 1
    %v1495 = vpop.permute.xlu0 %1494
    %1496 = vrot.lane.b32.xlu0 %v1490, 127
    %v1497 = vpop.permute.xlu0 %1496
    %1498 = vrot.lane.b32.xlu0 %v1491, 127
    %v1499 = vpop.permute.xlu0 %1498
    %v1500 = vsel %vm83, %v1497, %v1493
    %v1501 = vsel %vm83, %v1499, %v1495
    %v1502 = vadd.f32 %v1490, %v1500
    %v1503 = vadd.f32 %v1491, %v1501
    %v1504 = vsel %vm84, %v1493, %v1497
    %v1505 = vsel %vm84, %v1495, %v1499
    %v1506 = vadd.f32 %v1502, %v1504
    %v1507 = vadd.f32 %v1503, %v1505
    %v1508 = vmul.f32 %v1506, 0.11111111
    %v1509 = vmul.f32 %v1507, 0.11111111
    %v1510 = vmul.f32 %v1508, %v1508
    %v1511 = vmul.f32 %v1509, %v1509
    %v1512 = vmul.f32 %v1474, %v1474
    %v1513 = vmul.f32 %v1475, %v1475
    %v1514 = vrot.slane %v1512, 7
    %v1515 = vrot.slane %v1513, 7
    %v1516 = vsel %vm91, %v1514, %v1515
    %v1517 = vsel %vm91, %v1515, %v1514
    %v1518 = vrot.slane %v1512, 1
    %v1519 = vrot.slane %v1513, 1
    %v1520 = vsel %vm96, %v1518, %v1519
    %v1521 = vsel %vm96, %v1519, %v1518
    %v1522 = vsel %vm67, %v1520, %v1517
    %v1523 = vsel %vm68, %v1521, %v1516
    %v1524 = vadd.f32 %v1512, %v1522
    %v1525 = vadd.f32 %v1513, %v1523
    %v1526 = vsel %vm69, %v1517, %v1520
    %v1527 = vsel %vm70, %v1516, %v1521
    %v1528 = vadd.f32 %v1524, %v1526
    %v1529 = vadd.f32 %v1525, %v1527
    %1530 = vrot.lane.b32.xlu0 %v1528, 1
    %v1531 = vpop.permute.xlu0 %1530
    %1532 = vrot.lane.b32.xlu0 %v1529, 1
    %v1533 = vpop.permute.xlu0 %1532
    %1534 = vrot.lane.b32.xlu0 %v1528, 127
    %v1535 = vpop.permute.xlu0 %1534
    %1536 = vrot.lane.b32.xlu0 %v1529, 127
    %v1537 = vpop.permute.xlu0 %1536
    %v1538 = vsel %vm83, %v1535, %v1531
    %v1539 = vsel %vm83, %v1537, %v1533
    %v1540 = vadd.f32 %v1528, %v1538
    %v1541 = vadd.f32 %v1529, %v1539
    %v1542 = vsel %vm84, %v1531, %v1535
    %v1543 = vsel %vm84, %v1533, %v1537
    %v1544 = vadd.f32 %v1540, %v1542
    %v1545 = vadd.f32 %v1541, %v1543
    %v1546 = vmul.f32 %v1544, 0.11111111
    %v1547 = vmul.f32 %v1545, 0.11111111
    %v1548 = vsub.f32 %v1546, %v1510
    %v1549 = vsub.f32 %v1547, %v1511
    %v1550 = vmul.f32 %v1508, %v382
    %v1551 = vmul.f32 %v1509, %v383
    %v1552 = vmul.f32 %v1474, %v344
    %v1553 = vmul.f32 %v1475, %v345
    %v1554 = vrot.slane %v1552, 7
    %v1555 = vrot.slane %v1553, 7
    %v1556 = vsel %vm91, %v1554, %v1555
    %v1557 = vsel %vm91, %v1555, %v1554
    %v1558 = vrot.slane %v1552, 1
    %v1559 = vrot.slane %v1553, 1
    %v1560 = vsel %vm96, %v1558, %v1559
    %v1561 = vsel %vm96, %v1559, %v1558
    %v1562 = vsel %vm67, %v1560, %v1557
    %v1563 = vsel %vm68, %v1561, %v1556
    %v1564 = vadd.f32 %v1552, %v1562
    %v1565 = vadd.f32 %v1553, %v1563
    %v1566 = vsel %vm69, %v1557, %v1560
    %v1567 = vsel %vm70, %v1556, %v1561
    %v1568 = vadd.f32 %v1564, %v1566
    %v1569 = vadd.f32 %v1565, %v1567
    %1570 = vrot.lane.b32.xlu0 %v1568, 1
    %v1571 = vpop.permute.xlu0 %1570
    %1572 = vrot.lane.b32.xlu0 %v1569, 1
    %v1573 = vpop.permute.xlu0 %1572
    %1574 = vrot.lane.b32.xlu0 %v1568, 127
    %v1575 = vpop.permute.xlu0 %1574
    %1576 = vrot.lane.b32.xlu0 %v1569, 127
    %v1577 = vpop.permute.xlu0 %1576
    %v1578 = vsel %vm83, %v1575, %v1571
    %v1579 = vsel %vm83, %v1577, %v1573
    %v1580 = vadd.f32 %v1568, %v1578
    %v1581 = vadd.f32 %v1569, %v1579
    %v1582 = vsel %vm84, %v1571, %v1575
    %v1583 = vsel %vm84, %v1573, %v1577
    %v1584 = vadd.f32 %v1580, %v1582
    %v1585 = vadd.f32 %v1581, %v1583
    %v1586 = vmul.f32 %v1584, 0.22222222
    %v1587 = vmul.f32 %v1585, 0.22222222
    %v1588 = vsub.f32 %v1586, %v1550
    %v1589 = vsub.f32 %v1587, %v1551
    %v1590 = vadd.f32 %v1588, 0.0009
    %v1591 = vadd.f32 %v1589, 0.0009
    %v1592 = vadd.f32 %v1550, 0.0001
    %v1593 = vadd.f32 %v1551, 0.0001
    %v1594 = vmul.f32 %v1592, %v1590
    %v1595 = vmul.f32 %v1593, %v1591
    %v1596 = vadd.f32 %v1510, %v384
    %v1597 = vadd.f32 %v1511, %v385
    %v1598 = vadd.f32 %v1548, %v424
    %v1599 = vadd.f32 %v1549, %v425
    %v1600 = vmul.f32 %v1596, %v1598
    %v1601 = vmul.f32 %v1597, %v1599
    %v1602 = vrcp.pop %v1600
    %v1603 = vrcp.pop %v1601
    %v1604 = vmul.f32 %v1594, %v1602
    %v1605 = vmul.f32 %v1595, %v1603
    %v1606 = vsub.f32 1.0, %v1604
    %v1607 = vsub.f32 1.0, %v1605
    %v1608 = vmul.f32 %v1606, 0.5
    %v1609 = vmul.f32 %v1607, 0.5
    %v1610 = vmax.f32 %v1608, 0.0
    %v1611 = vmax.f32 %v1609, 0.0
    %v1612 = vmin.f32 %v1610, 1.0
    %v1613 = vmin.f32 %v1611, 1.0
    %v1614 = vadd.f32 %v1472, %v1612
    %v1615 = vadd.f32 %v1473, %v1613
    %v1616 = vmul.f32 %v1614, 0.25
    %v1617 = vmul.f32 %v1615, 0.25
    %v1618 = vsel %vm1046, inf, %v1616
    %v1619 = vsel %vm1047, inf, %v1617
    %v1620 = vmin.f32 %v1021, %v1618
    %v1621 = vmin.f32 %v1022, %v1619
    %vm1622 = vmand %vm449, %vm1046
    %vm1623 = vmand %vm450, %vm1047
    %v1624 = vsel %vm1622, 0.0, %v1620
    %v1625 = vsel %vm1623, 0.0, %v1621
    %1626 = vst [vmem:[#allocation8] sm:$0xff] %v1624
    %1627 = vst [vmem:[#allocation8 + $0x8] sm:$0xff] %v1625
    // Predicated region
    $region26: #{tpu_custom_call.1} parent=1 // pred_check
      _
    $region27: #{tpu_custom_call.1} parent=1 // pred_check_branch
      %1629 = sbr.rel (0) target = $region29
    $region28: #{tpu_custom_call.1} parent=1 // pred_region
      %1631 = vsyncadd [#allocation4], 0
      %s1632 = sshll.u32 [#allocation8], 4
      %s1633 = int_to_ptr.vmem [resolvable:$true] %s1632
      %s1634 = sshll.u32 %s3, 4
      %s1635 = int_to_ptr.hbm [resolvable:$true] %s1634
      %1640 = dma.vmem_to_hbm [thread:$0]  %s1633, 256, %s1635, [#allocation4], 128, 128, 8
    $region29: #{tpu_custom_call.1} parent=1 // pred_fallthru
      _
    // Predicated region
    $region30: #{tpu_custom_call.1} parent=1 // pred_check
      _
    $region31: #{tpu_custom_call.1} parent=1 // pred_check_branch
      %1642 = sbr.rel (0) target = $region33
    $region32: #{tpu_custom_call.1} parent=1 // pred_region
      %1644 = dma.done [#allocation4], 256
    $region33: #{tpu_custom_call.1} parent=1 // pred_fallthru
      _
    %1645 = vsyncpa [#allocation3], 1
    %1646 = vsyncpa [#allocation6], 1
    %1647 = vsyncpa [#allocation4], 1

</llo_original>
